<compile_context>
chip_gen: v5e
topology: v5e:2x2
jax: 0.10.0
libtpu: 0.0.40
codegen_flags: <defaults>
</compile_context>

<pallas_src>
import jax
import jax.numpy as jnp
from jax.experimental import pallas as pl
from jax.experimental.pallas import tpu as pltpu

LANE = 128       # TPU lane width: last dims padded to a multiple of this
SUBLANE = 16     # sublane padding (16 covers both f32 (8) and bf16 (16) tiles)


# ---------------------------------------------------------------------------
# Fused Pallas kernel: all GIN layers + global_add_pool + readout MLP
# ---------------------------------------------------------------------------

def fused_gin_kernel(adj_ref, x_ref, pool_ref, *refs):
    # refs = (w1_0, b1_0, w2_0, b2_0, ..., rw1, rb1, rw2, rb2, out_ref)
    out_ref = refs[-1]
    wrefs = refs[:-1]
    num_layers = (len(wrefs) - 4) // 4

    adj = adj_ref[...]          # (Np, Np)  bf16, adj_hat = A + (1+eps)*I
    x = x_ref[...]              # (Np, Fp)  bf16 node features (kept resident)

    for l in range(num_layers):
        w1 = wrefs[4 * l + 0][...]     # bf16
        b1 = wrefs[4 * l + 1][...]     # f32
        w2 = wrefs[4 * l + 2][...]     # bf16
        b2 = wrefs[4 * l + 3][...]     # f32
        # (1+eps)*x + sum_{j->i} x_j  ==  adj_hat @ x  (self-loop baked in)
        h = jnp.dot(adj, x, preferred_element_type=jnp.float32)
        # MLP: Linear -> ReLU -> Linear -> ReLU (bf16 MXU inputs, f32 acc/VPU)
        h = jnp.maximum(
            jnp.dot(h.astype(jnp.bfloat16), w1,
                    preferred_element_type=jnp.float32) + b1, 0.0)
        x = jnp.maximum(
            jnp.dot(h.astype(jnp.bfloat16), w2,
                    preferred_element_type=jnp.float32) + b2, 0.0)
        x = x.astype(jnp.bfloat16)

    rw1 = wrefs[-4][...]   # bf16
    rb1 = wrefs[-3][...]   # f32
    rw2 = wrefs[-2][...]   # bf16
    rb2 = wrefs[-1][...]   # f32

    # global_add_pool as a dense pooling matmul, then readout MLP
    pooled = jnp.dot(pool_ref[...], x, preferred_element_type=jnp.float32)
    h = jnp.maximum(
        jnp.dot(pooled.astype(jnp.bfloat16), rw1,
                preferred_element_type=jnp.float32) + rb1, 0.0)
    out_ref[...] = jnp.dot(h.astype(jnp.bfloat16), rw2,
                           preferred_element_type=jnp.float32) + rb2


# ---------------------------------------------------------------------------
# Padding helpers
# ---------------------------------------------------------------------------

def _round_up(v, m):
    return (v + m - 1) // m * m


def _pad2(a, rows, cols, dtype):
    """Zero-pad a 2D array to (rows, cols) and cast."""
    out = jnp.zeros((rows, cols), dtype)
    return out.at[: a.shape[0], : a.shape[1]].set(a.astype(dtype))


# ---------------------------------------------------------------------------
# Model wrapper
# ---------------------------------------------------------------------------

def init_linear(key, fan_in, fan_out):
    # deterministic PyTorch-style uniform(-1/sqrt(fan_in), 1/sqrt(fan_in))
    kw, kb = jax.random.split(key)
    bound = 1.0 / jnp.sqrt(float(fan_in))
    w = jax.random.uniform(kw, (fan_in, fan_out), jnp.float32, -bound, bound)
    b = jax.random.uniform(kb, (1, fan_out), jnp.float32, -bound, bound)
    return w, b


def init_gin_params(key, num_features, num_targets, num_layers, hidden_size):
    keys = jax.random.split(key, 2 * num_layers + 2)
    layers = []
    in_dim = num_features
    for l in range(num_layers):
        w1, b1 = init_linear(keys[2 * l], in_dim, hidden_size)
        w2, b2 = init_linear(keys[2 * l + 1], hidden_size, hidden_size)
        layers.append((w1, b1, w2, b2))
        in_dim = hidden_size
    rw1, rb1 = init_linear(keys[-2], hidden_size, hidden_size)
    rw2, rb2 = init_linear(keys[-1], hidden_size, num_targets)
    return layers, (rw1, rb1, rw2, rb2)


def gin_forward(params, x, edge_index, batch_index, num_graphs, eps=0.0):
    layers, ro = params
    rw1, rb1, rw2, rb2 = ro

    n, f = x.shape
    h = layers[0][2].shape[0]          # hidden size
    t = rw2.shape[1]                   # num targets
    num_layers = len(layers)

    # --- padded shapes -------------------------------------------------------
    # N padded to LANE so adj / pool last dims are lane-dense (unmasked loads,
    # full-width MXU contraction).
    n_pad = _round_up(n, LANE)
    g_pad = _round_up(num_graphs, SUBLANE)
    f_pad = _round_up(f, LANE)
    h_pad = _round_up(h, LANE)
    t_pad = _round_up(t, LANE)

    # --- dense graph operators, built DIRECTLY at padded shape ---------------
    src, dst = edge_index[0], edge_index[1]
    node_ids = jnp.arange(n, dtype=jnp.int32)
    # adjacency with self-loop folded in: A_hat[dst, src] += 1 ; A_hat += (1+eps)*I
    # (edge counts + 1+eps are small integers-ish, exact in bf16)
    adj = jnp.zeros((n_pad, n_pad), jnp.float32).at[dst, src].add(1.0)
    adj = adj.at[node_ids, node_ids].add(1.0 + eps)
    adj_p = adj.astype(jnp.bfloat16)
    # pooling matrix: P[g, i] = 1 iff batch_index[i] == g
    pool_p = (jnp.zeros((g_pad, n_pad), jnp.float32)
              .at[batch_index, node_ids].set(1.0)).astype(jnp.bfloat16)
    # node features
    x_p = jnp.zeros((n_pad, f_pad), jnp.bfloat16).at[:n, :f].set(
        x.astype(jnp.bfloat16))

    # --- weights: bf16 matrices, f32 biases (zero-padded) ---------------------
    weight_args = []
    in_dim_pad = f_pad
    for (w1, b1, w2, b2) in layers:
        weight_args += [
            _pad2(w1, in_dim_pad, h_pad, jnp.bfloat16),
            _pad2(b1, 1, h_pad, jnp.float32),
            _pad2(w2, h_pad, h_pad, jnp.bfloat16),
            _pad2(b2, 1, h_pad, jnp.float32),
        ]
        in_dim_pad = h_pad
    weight_args += [
        _pad2(rw1, h_pad, h_pad, jnp.bfloat16),
        _pad2(rb1, 1, h_pad, jnp.float32),
        _pad2(rw2, h_pad, t_pad, jnp.bfloat16),
        _pad2(rb2, 1, t_pad, jnp.float32),
    ]

    inputs = [adj_p, x_p, pool_p] + weight_args

    # --- cost estimate (advisory) ---------------------------------------------
    flops = 0
    in_d = f_pad
    for _ in range(num_layers):
        flops += 2 * n_pad * n_pad * in_d          # A_hat @ x
        flops += 2 * n_pad * in_d * h_pad          # first linear
        flops += 2 * n_pad * h_pad * h_pad         # second linear
        in_d = h_pad
    flops += 2 * g_pad * n_pad * h_pad             # pooling matmul
    flops += 2 * g_pad * h_pad * h_pad             # readout linear 1
    flops += 2 * g_pad * h_pad * t_pad             # readout linear 2
    bytes_accessed = sum(int(a.size) * a.dtype.itemsize for a in inputs)
    bytes_accessed += g_pad * t_pad * 4
    cost = pl.CostEstimate(flops=flops, transcendentals=0,
                           bytes_accessed=bytes_accessed)

    vmem_spec = pl.BlockSpec(memory_space=pltpu.MemorySpace.VMEM)
    out_p = pl.pallas_call(
        fused_gin_kernel,
        out_shape=jax.ShapeDtypeStruct((g_pad, t_pad), jnp.float32),
        in_specs=[vmem_spec] * len(inputs),
        out_specs=vmem_spec,
        cost_estimate=cost,
        compiler_params=pltpu.CompilerParams(
            # well under v7x's 64 MiB physical VMEM; raise toward ~96 MiB on
            # v5e/v6e before switching to a tiled grid at larger N.
            vmem_limit_bytes=32 * 1024 * 1024),
    )(*inputs)

    return out_p[:num_graphs, :t]


def gin_reference(params, x, edge_index, batch_index, num_graphs, eps=0.0):
    """Plain-JAX reference mirroring the kernel's bf16 MXU-operand casting."""
    layers, ro = params
    n = x.shape[0]
    src, dst = edge_index[0], edge_index[1]
    adj = jnp.zeros((n, n), jnp.float32).at[dst, src].add(1.0)
    adj = adj + (1.0 + eps) * jnp.eye(n, dtype=jnp.float32)
    adj = adj.astype(jnp.bfloat16)
    pool = jax.nn.one_hot(batch_index, num_graphs, dtype=jnp.bfloat16).T

    def bdot(a, b):
        return jnp.dot(a.astype(jnp.bfloat16), b.astype(jnp.bfloat16),
                       preferred_element_type=jnp.float32)

    x = x.astype(jnp.bfloat16)
    for (w1, b1, w2, b2) in layers:
        h = bdot(adj, x)
        h = jax.nn.relu(bdot(h, w1) + b1)
        x = jax.nn.relu(bdot(h, w2) + b2).astype(jnp.bfloat16)
    rw1, rb1, rw2, rb2 = ro
    p = bdot(pool, x)
    h = jax.nn.relu(bdot(p, rw1) + rb1)
    return bdot(h, rw2) + rb2


# ---------------------------------------------------------------------------
# Main
# ---------------------------------------------------------------------------

if __name__ == "__main__":
    num_features = 4
    num_targets = 3
    num_layers = 3
    hidden_size = 32

    num_nodes = 16
    num_edges = 40
    num_graphs = 2

    key = jax.random.PRNGKey(0)
    k_params, k_x, k_src, k_dst = jax.random.split(key, 4)

    params = init_gin_params(k_params, num_features, num_targets,
                             num_layers, hidden_size)

    x = jax.random.normal(k_x, (num_nodes, num_features), jnp.float32)
    src = jax.random.randint(k_src, (num_edges,), 0, num_nodes, jnp.int32)
    dst = jax.random.randint(k_dst, (num_edges,), 0, num_nodes, jnp.int32)
    edge_index = jnp.stack([src, dst], axis=0)          # (2, E)
    batch_index = jnp.concatenate([
        jnp.zeros((num_nodes // 2,), jnp.int32),
        jnp.ones((num_nodes - num_nodes // 2,), jnp.int32),
    ])                                                   # (N,)

    out = gin_forward(params, x, edge_index, batch_index, num_graphs)
    out = jax.block_until_ready(out)

    ref = gin_reference(params, x, edge_index, batch_index, num_graphs)
    assert out.shape == (num_graphs, num_targets)
    assert jnp.allclose(out, ref, atol=2e-2, rtol=2e-2), (out, ref)

    print("KERNEL_OK")
</pallas_src>

<mosaic_0001>
module attributes {stable_mosaic.version = 11 : i64} {
  func.func @fused_gin_kernel(%arg0: memref<128x128xbf16, #tpu.memory_space<vmem>>, %arg1: memref<128x128xbf16, #tpu.memory_space<vmem>>, %arg2: memref<16x128xbf16, #tpu.memory_space<vmem>>, %arg3: memref<128x128xbf16, #tpu.memory_space<vmem>>, %arg4: memref<1x128xf32, #tpu.memory_space<vmem>>, %arg5: memref<128x128xbf16, #tpu.memory_space<vmem>>, %arg6: memref<1x128xf32, #tpu.memory_space<vmem>>, %arg7: memref<128x128xbf16, #tpu.memory_space<vmem>>, %arg8: memref<1x128xf32, #tpu.memory_space<vmem>>, %arg9: memref<128x128xbf16, #tpu.memory_space<vmem>>, %arg10: memref<1x128xf32, #tpu.memory_space<vmem>>, %arg11: memref<128x128xbf16, #tpu.memory_space<vmem>>, %arg12: memref<1x128xf32, #tpu.memory_space<vmem>>, %arg13: memref<128x128xbf16, #tpu.memory_space<vmem>>, %arg14: memref<1x128xf32, #tpu.memory_space<vmem>>, %arg15: memref<128x128xbf16, #tpu.memory_space<vmem>>, %arg16: memref<1x128xf32, #tpu.memory_space<vmem>>, %arg17: memref<128x128xbf16, #tpu.memory_space<vmem>>, %arg18: memref<1x128xf32, #tpu.memory_space<vmem>>, %arg19: memref<16x128xf32, #tpu.memory_space<vmem>>) attributes {dimension_semantics = [], scalar_prefetch = 0 : i64, scratch_operands = 0 : i64, tpu.core_type = #tpu.core_type<tc>} {
    %c0 = arith.constant 0 : index
    %c0_0 = arith.constant 0 : index
    %0 = vector.load %arg0[%c0, %c0_0] : memref<128x128xbf16, #tpu.memory_space<vmem>>, vector<128x128xbf16>
    %c0_1 = arith.constant 0 : index
    %c0_2 = arith.constant 0 : index
    %1 = vector.load %arg1[%c0_1, %c0_2] : memref<128x128xbf16, #tpu.memory_space<vmem>>, vector<128x128xbf16>
    %c0_3 = arith.constant 0 : index
    %c0_4 = arith.constant 0 : index
    %2 = vector.load %arg3[%c0_3, %c0_4] : memref<128x128xbf16, #tpu.memory_space<vmem>>, vector<128x128xbf16>
    %c0_5 = arith.constant 0 : index
    %c0_6 = arith.constant 0 : index
    %3 = vector.load %arg4[%c0_5, %c0_6] : memref<1x128xf32, #tpu.memory_space<vmem>>, vector<1x128xf32>
    %c0_7 = arith.constant 0 : index
    %c0_8 = arith.constant 0 : index
    %4 = vector.load %arg5[%c0_7, %c0_8] : memref<128x128xbf16, #tpu.memory_space<vmem>>, vector<128x128xbf16>
    %c0_9 = arith.constant 0 : index
    %c0_10 = arith.constant 0 : index
    %5 = vector.load %arg6[%c0_9, %c0_10] : memref<1x128xf32, #tpu.memory_space<vmem>>, vector<1x128xf32>
    %cst = arith.constant dense<0.000000e+00> : vector<128x128xf32>
    %6 = tpu.matmul %0, %1, %cst {dimension_numbers = #tpu.dot_dimension_numbers<[1], [0], [0], [1], [0, 0, 1, 1], [], []>} : vector<128x128xbf16>, vector<128x128xbf16>, vector<128x128xf32> -> vector<128x128xf32>
    %7 = arith.truncf %6 : vector<128x128xf32> to vector<128x128xbf16>
    %cst_11 = arith.constant dense<0.000000e+00> : vector<128x128xf32>
    %8 = tpu.matmul %7, %2, %cst_11 {dimension_numbers = #tpu.dot_dimension_numbers<[1], [0], [0], [1], [0, 0, 1, 1], [], []>} : vector<128x128xbf16>, vector<128x128xbf16>, vector<128x128xf32> -> vector<128x128xf32>
    %9 = vector.broadcast %3 : vector<1x128xf32> to vector<128x128xf32>
    %10 = arith.addf %8, %9 : vector<128x128xf32>
    %cst_12 = arith.constant 0.000000e+00 : f32
    %11 = vector.broadcast %cst_12 : f32 to vector<128x128xf32>
    %12 = arith.maximumf %10, %11 : vector<128x128xf32>
    %13 = arith.truncf %12 : vector<128x128xf32> to vector<128x128xbf16>
    %cst_13 = arith.constant dense<0.000000e+00> : vector<128x128xf32>
    %14 = tpu.matmul %13, %4, %cst_13 {dimension_numbers = #tpu.dot_dimension_numbers<[1], [0], [0], [1], [0, 0, 1, 1], [], []>} : vector<128x128xbf16>, vector<128x128xbf16>, vector<128x128xf32> -> vector<128x128xf32>
    %15 = vector.broadcast %5 : vector<1x128xf32> to vector<128x128xf32>
    %16 = arith.addf %14, %15 : vector<128x128xf32>
    %cst_14 = arith.constant 0.000000e+00 : f32
    %17 = vector.broadcast %cst_14 : f32 to vector<128x128xf32>
    %18 = arith.maximumf %16, %17 : vector<128x128xf32>
    %19 = arith.truncf %18 : vector<128x128xf32> to vector<128x128xbf16>
    %c0_15 = arith.constant 0 : index
    %c0_16 = arith.constant 0 : index
    %20 = vector.load %arg7[%c0_15, %c0_16] : memref<128x128xbf16, #tpu.memory_space<vmem>>, vector<128x128xbf16>
    %c0_17 = arith.constant 0 : index
    %c0_18 = arith.constant 0 : index
    %21 = vector.load %arg8[%c0_17, %c0_18] : memref<1x128xf32, #tpu.memory_space<vmem>>, vector<1x128xf32>
    %c0_19 = arith.constant 0 : index
    %c0_20 = arith.constant 0 : index
    %22 = vector.load %arg9[%c0_19, %c0_20] : memref<128x128xbf16, #tpu.memory_space<vmem>>, vector<128x128xbf16>
    %c0_21 = arith.constant 0 : index
    %c0_22 = arith.constant 0 : index
    %23 = vector.load %arg10[%c0_21, %c0_22] : memref<1x128xf32, #tpu.memory_space<vmem>>, vector<1x128xf32>
    %cst_23 = arith.constant dense<0.000000e+00> : vector<128x128xf32>
    %24 = tpu.matmul %0, %19, %cst_23 {dimension_numbers = #tpu.dot_dimension_numbers<[1], [0], [0], [1], [0, 0, 1, 1], [], []>} : vector<128x128xbf16>, vector<128x128xbf16>, vector<128x128xf32> -> vector<128x128xf32>
    %25 = arith.truncf %24 : vector<128x128xf32> to vector<128x128xbf16>
    %cst_24 = arith.constant dense<0.000000e+00> : vector<128x128xf32>
    %26 = tpu.matmul %25, %20, %cst_24 {dimension_numbers = #tpu.dot_dimension_numbers<[1], [0], [0], [1], [0, 0, 1, 1], [], []>} : vector<128x128xbf16>, vector<128x128xbf16>, vector<128x128xf32> -> vector<128x128xf32>
    %27 = vector.broadcast %21 : vector<1x128xf32> to vector<128x128xf32>
    %28 = arith.addf %26, %27 : vector<128x128xf32>
    %cst_25 = arith.constant 0.000000e+00 : f32
    %29 = vector.broadcast %cst_25 : f32 to vector<128x128xf32>
    %30 = arith.maximumf %28, %29 : vector<128x128xf32>
    %31 = arith.truncf %30 : vector<128x128xf32> to vector<128x128xbf16>
    %cst_26 = arith.constant dense<0.000000e+00> : vector<128x128xf32>
    %32 = tpu.matmul %31, %22, %cst_26 {dimension_numbers = #tpu.dot_dimension_numbers<[1], [0], [0], [1], [0, 0, 1, 1], [], []>} : vector<128x128xbf16>, vector<128x128xbf16>, vector<128x128xf32> -> vector<128x128xf32>
    %33 = vector.broadcast %23 : vector<1x128xf32> to vector<128x128xf32>
    %34 = arith.addf %32, %33 : vector<128x128xf32>
    %cst_27 = arith.constant 0.000000e+00 : f32
    %35 = vector.broadcast %cst_27 : f32 to vector<128x128xf32>
    %36 = arith.maximumf %34, %35 : vector<128x128xf32>
    %37 = arith.truncf %36 : vector<128x128xf32> to vector<128x128xbf16>
    %c0_28 = arith.constant 0 : index
    %c0_29 = arith.constant 0 : index
    %38 = vector.load %arg11[%c0_28, %c0_29] : memref<128x128xbf16, #tpu.memory_space<vmem>>, vector<128x128xbf16>
    %c0_30 = arith.constant 0 : index
    %c0_31 = arith.constant 0 : index
    %39 = vector.load %arg12[%c0_30, %c0_31] : memref<1x128xf32, #tpu.memory_space<vmem>>, vector<1x128xf32>
    %c0_32 = arith.constant 0 : index
    %c0_33 = arith.constant 0 : index
    %40 = vector.load %arg13[%c0_32, %c0_33] : memref<128x128xbf16, #tpu.memory_space<vmem>>, vector<128x128xbf16>
    %c0_34 = arith.constant 0 : index
    %c0_35 = arith.constant 0 : index
    %41 = vector.load %arg14[%c0_34, %c0_35] : memref<1x128xf32, #tpu.memory_space<vmem>>, vector<1x128xf32>
    %cst_36 = arith.constant dense<0.000000e+00> : vector<128x128xf32>
    %42 = tpu.matmul %0, %37, %cst_36 {dimension_numbers = #tpu.dot_dimension_numbers<[1], [0], [0], [1], [0, 0, 1, 1], [], []>} : vector<128x128xbf16>, vector<128x128xbf16>, vector<128x128xf32> -> vector<128x128xf32>
    %43 = arith.truncf %42 : vector<128x128xf32> to vector<128x128xbf16>
    %cst_37 = arith.constant dense<0.000000e+00> : vector<128x128xf32>
    %44 = tpu.matmul %43, %38, %cst_37 {dimension_numbers = #tpu.dot_dimension_numbers<[1], [0], [0], [1], [0, 0, 1, 1], [], []>} : vector<128x128xbf16>, vector<128x128xbf16>, vector<128x128xf32> -> vector<128x128xf32>
    %45 = vector.broadcast %39 : vector<1x128xf32> to vector<128x128xf32>
    %46 = arith.addf %44, %45 : vector<128x128xf32>
    %cst_38 = arith.constant 0.000000e+00 : f32
    %47 = vector.broadcast %cst_38 : f32 to vector<128x128xf32>
    %48 = arith.maximumf %46, %47 : vector<128x128xf32>
    %49 = arith.truncf %48 : vector<128x128xf32> to vector<128x128xbf16>
    %cst_39 = arith.constant dense<0.000000e+00> : vector<128x128xf32>
    %50 = tpu.matmul %49, %40, %cst_39 {dimension_numbers = #tpu.dot_dimension_numbers<[1], [0], [0], [1], [0, 0, 1, 1], [], []>} : vector<128x128xbf16>, vector<128x128xbf16>, vector<128x128xf32> -> vector<128x128xf32>
    %51 = vector.broadcast %41 : vector<1x128xf32> to vector<128x128xf32>
    %52 = arith.addf %50, %51 : vector<128x128xf32>
    %cst_40 = arith.constant 0.000000e+00 : f32
    %53 = vector.broadcast %cst_40 : f32 to vector<128x128xf32>
    %54 = arith.maximumf %52, %53 : vector<128x128xf32>
    %55 = arith.truncf %54 : vector<128x128xf32> to vector<128x128xbf16>
    %c0_41 = arith.constant 0 : index
    %c0_42 = arith.constant 0 : index
    %56 = vector.load %arg15[%c0_41, %c0_42] : memref<128x128xbf16, #tpu.memory_space<vmem>>, vector<128x128xbf16>
    %c0_43 = arith.constant 0 : index
    %c0_44 = arith.constant 0 : index
    %57 = vector.load %arg16[%c0_43, %c0_44] : memref<1x128xf32, #tpu.memory_space<vmem>>, vector<1x128xf32>
    %c0_45 = arith.constant 0 : index
    %c0_46 = arith.constant 0 : index
    %58 = vector.load %arg17[%c0_45, %c0_46] : memref<128x128xbf16, #tpu.memory_space<vmem>>, vector<128x128xbf16>
    %c0_47 = arith.constant 0 : index
    %c0_48 = arith.constant 0 : index
    %59 = vector.load %arg18[%c0_47, %c0_48] : memref<1x128xf32, #tpu.memory_space<vmem>>, vector<1x128xf32>
    %c0_49 = arith.constant 0 : index
    %c0_50 = arith.constant 0 : index
    %60 = vector.load %arg2[%c0_49, %c0_50] : memref<16x128xbf16, #tpu.memory_space<vmem>>, vector<16x128xbf16>
    %cst_51 = arith.constant dense<0.000000e+00> : vector<16x128xf32>
    %61 = tpu.matmul %60, %55, %cst_51 {dimension_numbers = #tpu.dot_dimension_numbers<[1], [0], [0], [1], [0, 0, 1, 1], [], []>} : vector<16x128xbf16>, vector<128x128xbf16>, vector<16x128xf32> -> vector<16x128xf32>
    %62 = arith.truncf %61 : vector<16x128xf32> to vector<16x128xbf16>
    %cst_52 = arith.constant dense<0.000000e+00> : vector<16x128xf32>
    %63 = tpu.matmul %62, %56, %cst_52 {dimension_numbers = #tpu.dot_dimension_numbers<[1], [0], [0], [1], [0, 0, 1, 1], [], []>} : vector<16x128xbf16>, vector<128x128xbf16>, vector<16x128xf32> -> vector<16x128xf32>
    %64 = vector.broadcast %57 : vector<1x128xf32> to vector<16x128xf32>
    %65 = arith.addf %63, %64 : vector<16x128xf32>
    %cst_53 = arith.constant 0.000000e+00 : f32
    %66 = vector.broadcast %cst_53 : f32 to vector<16x128xf32>
    %67 = arith.maximumf %65, %66 : vector<16x128xf32>
    %68 = arith.truncf %67 : vector<16x128xf32> to vector<16x128xbf16>
    %cst_54 = arith.constant dense<0.000000e+00> : vector<16x128xf32>
    %69 = tpu.matmul %68, %58, %cst_54 {dimension_numbers = #tpu.dot_dimension_numbers<[1], [0], [0], [1], [0, 0, 1, 1], [], []>} : vector<16x128xbf16>, vector<128x128xbf16>, vector<16x128xf32> -> vector<16x128xf32>
    %70 = vector.broadcast %59 : vector<1x128xf32> to vector<16x128xf32>
    %71 = arith.addf %69, %70 : vector<16x128xf32>
    %c0_55 = arith.constant 0 : index
    %c0_56 = arith.constant 0 : index
    %72 = vector.load %arg19[%c0_55, %c0_56] : memref<16x128xf32, #tpu.memory_space<vmem>>, vector<16x128xf32>
    tpu.vector_store %arg19[%c0_55, %c0_56], %71 {strides = array<i32>} : memref<16x128xf32, #tpu.memory_space<vmem>>, vector<16x128xf32>,
    return
  }
}

</mosaic_0001>

<llo_original>
// kernel: tpu_custom_call.1
$region0: #{tpu_custom_call.1}
  #allocation0 [shape = 'u32[]', space=smem, size = 0x4, offset = 0x4, fixed_abs, tag = 'smem constant byte address 0x4 - core index']
  #allocation1 [shape = 'u32[72,128]{1,0:T(1,128)}', space=vmem, size = 0x9000, scoped, tag = 'internal scratch']
  %s0 = inlined_call_operand.hbm [shape: bf16[128,128], index: 0, kind: input, shape index: {}]
  %s1 = inlined_call_operand.hbm [shape: bf16[128,128], index: 1, kind: input, shape index: {}]
  %s2 = inlined_call_operand.hbm [shape: bf16[16,128], index: 2, kind: input, shape index: {}]
  %s3 = inlined_call_operand.hbm [shape: bf16[128,128], index: 3, kind: input, shape index: {}]
  %s4 = inlined_call_operand.vmem [shape: f32[1,128], index: 4, kind: input, shape index: {}]
  %s5 = inlined_call_operand.hbm [shape: bf16[128,128], index: 5, kind: input, shape index: {}]
  %s6 = inlined_call_operand.vmem [shape: f32[1,128], index: 6, kind: input, shape index: {}]
  %s7 = inlined_call_operand.hbm [shape: bf16[128,128], index: 7, kind: input, shape index: {}]
  %s8 = inlined_call_operand.vmem [shape: f32[1,128], index: 8, kind: input, shape index: {}]
  %s9 = inlined_call_operand.hbm [shape: bf16[128,128], index: 9, kind: input, shape index: {}]
  %s10 = inlined_call_operand.vmem [shape: f32[1,128], index: 10, kind: input, shape index: {}]
  %s11 = inlined_call_operand.hbm [shape: bf16[128,128], index: 11, kind: input, shape index: {}]
  %s12 = inlined_call_operand.vmem [shape: f32[1,128], index: 12, kind: input, shape index: {}]
  %s13 = inlined_call_operand.hbm [shape: bf16[128,128], index: 13, kind: input, shape index: {}]
  %s14 = inlined_call_operand.vmem [shape: f32[1,128], index: 14, kind: input, shape index: {}]
  %s15 = inlined_call_operand.hbm [shape: bf16[128,128], index: 15, kind: input, shape index: {}]
  %s16 = inlined_call_operand.vmem [shape: f32[1,128], index: 16, kind: input, shape index: {}]
  %s17 = inlined_call_operand.hbm [shape: bf16[128,128], index: 17, kind: input, shape index: {}]
  %s18 = inlined_call_operand.vmem [shape: f32[1,128], index: 18, kind: input, shape index: {}]
  %s19 = inlined_call_operand.hbm [shape: f32[16,128], index: 19, kind: output, shape index: {}]
  %s20 = sld [smem:[#allocation0]]
  $region130: #{tpu_custom_call.1} parent=0
    _
  %s22 = ssub.s32 1, %s20
  %s23 = scalar_select 0, %s22, %s20
  $region1: #{tpu_custom_call.1} parent=0
    #allocation2 [shape = 'u8[32768]{0}', space=vmem, size = 0x8000, scoped, tag = 'input window, operand 0, single buffered']
    #allocation3 [shape = 's32[1]{0}', space=sflag, size = 0x4, scoped, tag = 'scoped memory for tpu_custom_call.1']
    #allocation4 [shape = 's32[1]{0}', space=sflag, size = 0x4, scoped, tag = 'scoped memory for tpu_custom_call.1']
    #allocation5 [shape = 'u8[32768]{0}', space=vmem, size = 0x8000, scoped, tag = 'input window, operand 1, single buffered']
    #allocation6 [shape = 's32[1]{0}', space=sflag, size = 0x4, scoped, tag = 'scoped memory for tpu_custom_call.1']
    #allocation7 [shape = 'u8[4096]{0}', space=vmem, size = 0x1000, scoped, tag = 'input window, operand 2, single buffered']
    #allocation8 [shape = 'u8[32768]{0}', space=vmem, size = 0x8000, scoped, tag = 'input window, operand 3, single buffered']
    #allocation9 [shape = 's32[1]{0}', space=sflag, size = 0x4, scoped, tag = 'scoped memory for tpu_custom_call.1']
    #allocation10 [shape = 'u8[32768]{0}', space=vmem, size = 0x8000, scoped, tag = 'input window, operand 5, single buffered']
    #allocation11 [shape = 'u8[32768]{0}', space=vmem, size = 0x8000, scoped, tag = 'input window, operand 7, single buffered']
    #allocation12 [shape = 's32[1]{0}', space=sflag, size = 0x4, scoped, tag = 'scoped memory for tpu_custom_call.1']
    #allocation13 [shape = 'u8[32768]{0}', space=vmem, size = 0x8000, scoped, tag = 'input window, operand 9, single buffered']
    #allocation14 [shape = 'u8[32768]{0}', space=vmem, size = 0x8000, scoped, tag = 'input window, operand 11, single buffered']
    #allocation15 [shape = 's32[1]{0}', space=sflag, size = 0x4, scoped, tag = 'scoped memory for tpu_custom_call.1']
    #allocation16 [shape = 'u8[32768]{0}', space=vmem, size = 0x8000, scoped, tag = 'input window, operand 13, single buffered']
    #allocation17 [shape = 'u8[32768]{0}', space=vmem, size = 0x8000, scoped, tag = 'input window, operand 15, single buffered']
    #allocation18 [shape = 's32[1]{0}', space=sflag, size = 0x4, scoped, tag = 'scoped memory for tpu_custom_call.1']
    #allocation19 [shape = 'u8[32768]{0}', space=vmem, size = 0x8000, scoped, tag = 'input window, operand 17, single buffered']
    #allocation20 [shape = 'u8[8192]{0}', space=vmem, size = 0x2000, scoped, tag = 'output window, operand 0, single buffered']
    %24 = vsyncpa [#allocation3], 0
    %25 = vsyncpa [#allocation6], 0
    %26 = vsyncpa [#allocation9], 0
    %27 = vsyncpa [#allocation12], 0
    %28 = vsyncpa [#allocation15], 0
    %29 = vsyncpa [#allocation18], 0
    %30 = vsyncpa [#allocation4], 0
    // Predicated region
    $region2: #{tpu_custom_call.1} parent=1 // pred_check
      _
    $region3: #{tpu_custom_call.1} parent=1 // pred_check_branch
      %32 = sbr.rel (0) target = $region5
    $region4: #{tpu_custom_call.1} parent=1 // pred_region
      %34 = vsyncadd [#allocation3], 0
      %s35 = sshll.u32 %s0, 4
      %s36 = int_to_ptr.hbm [resolvable:$true] %s35
      %s37 = sshll.u32 [#allocation2], 4
      %s38 = int_to_ptr.vmem [resolvable:$true] %s37
      %43 = dma.hbm_to_vmem [thread:$0]  %s36, 1024, %s38, [#allocation3], 64, 64, 4
    $region5: #{tpu_custom_call.1} parent=1 // pred_fallthru
      _
    // Predicated region
    $region6: #{tpu_custom_call.1} parent=1 // pred_check
      _
    $region7: #{tpu_custom_call.1} parent=1 // pred_check_branch
      %45 = sbr.rel (0) target = $region9
    $region8: #{tpu_custom_call.1} parent=1 // pred_region
      %47 = vsyncadd [#allocation6], 0
      %s48 = sshll.u32 %s1, 4
      %s49 = int_to_ptr.hbm [resolvable:$true] %s48
      %s50 = sshll.u32 [#allocation5], 4
      %s51 = int_to_ptr.vmem [resolvable:$true] %s50
      %56 = dma.hbm_to_vmem [thread:$0]  %s49, 1024, %s51, [#allocation6], 64, 64, 4
    $region9: #{tpu_custom_call.1} parent=1 // pred_fallthru
      _
    // Predicated region
    $region10: #{tpu_custom_call.1} parent=1 // pred_check
      _
    $region11: #{tpu_custom_call.1} parent=1 // pred_check_branch
      %58 = sbr.rel (0) target = $region13
    $region12: #{tpu_custom_call.1} parent=1 // pred_region
      %60 = vsyncadd [#allocation6], 0
      %s61 = sshll.u32 %s2, 4
      %s62 = int_to_ptr.hbm [resolvable:$true] %s61
      %s63 = sshll.u32 [#allocation7], 4
      %s64 = int_to_ptr.vmem [resolvable:$true] %s63
      %69 = dma.hbm_to_vmem [thread:$0]  %s62, 128, %s64, [#allocation6], 64, 64, 4
    $region13: #{tpu_custom_call.1} parent=1 // pred_fallthru
      _
    // Predicated region
    $region14: #{tpu_custom_call.1} parent=1 // pred_check
      _
    $region15: #{tpu_custom_call.1} parent=1 // pred_check_branch
      %71 = sbr.rel (0) target = $region17
    $region16: #{tpu_custom_call.1} parent=1 // pred_region
      %73 = vsyncadd [#allocation9], 0
      %s74 = sshll.u32 %s3, 4
      %s75 = int_to_ptr.hbm [resolvable:$true] %s74
      %s76 = sshll.u32 [#allocation8], 4
      %s77 = int_to_ptr.vmem [resolvable:$true] %s76
      %82 = dma.hbm_to_vmem [thread:$0]  %s75, 1024, %s77, [#allocation9], 64, 64, 4
    $region17: #{tpu_custom_call.1} parent=1 // pred_fallthru
      _
    // Predicated region
    $region18: #{tpu_custom_call.1} parent=1 // pred_check
      _
    $region19: #{tpu_custom_call.1} parent=1 // pred_check_branch
      %84 = sbr.rel (0) target = $region21
    $region20: #{tpu_custom_call.1} parent=1 // pred_region
      _
    $region21: #{tpu_custom_call.1} parent=1 // pred_fallthru
      _
    // Predicated region
    $region22: #{tpu_custom_call.1} parent=1 // pred_check
      _
    $region23: #{tpu_custom_call.1} parent=1 // pred_check_branch
      %86 = sbr.rel (0) target = $region25
    $region24: #{tpu_custom_call.1} parent=1 // pred_region
      %88 = vsyncadd [#allocation9], 0
      %s89 = sshll.u32 %s5, 4
      %s90 = int_to_ptr.hbm [resolvable:$true] %s89
      %s91 = sshll.u32 [#allocation10], 4
      %s92 = int_to_ptr.vmem [resolvable:$true] %s91
      %97 = dma.hbm_to_vmem [thread:$0]  %s90, 1024, %s92, [#allocation9], 64, 64, 4
    $region25: #{tpu_custom_call.1} parent=1 // pred_fallthru
      _
    // Predicated region
    $region26: #{tpu_custom_call.1} parent=1 // pred_check
      _
    $region27: #{tpu_custom_call.1} parent=1 // pred_check_branch
      %99 = sbr.rel (0) target = $region29
    $region28: #{tpu_custom_call.1} parent=1 // pred_region
      _
    $region29: #{tpu_custom_call.1} parent=1 // pred_fallthru
      _
    // Predicated region
    $region30: #{tpu_custom_call.1} parent=1 // pred_check
      _
    $region31: #{tpu_custom_call.1} parent=1 // pred_check_branch
      %101 = sbr.rel (0) target = $region33
    $region32: #{tpu_custom_call.1} parent=1 // pred_region
      %103 = vsyncadd [#allocation12], 0
      %s104 = sshll.u32 %s7, 4
      %s105 = int_to_ptr.hbm [resolvable:$true] %s104
      %s106 = sshll.u32 [#allocation11], 4
      %s107 = int_to_ptr.vmem [resolvable:$true] %s106
      %112 = dma.hbm_to_vmem [thread:$0]  %s105, 1024, %s107, [#allocation12], 64, 64, 4
    $region33: #{tpu_custom_call.1} parent=1 // pred_fallthru
      _
    // Predicated region
    $region34: #{tpu_custom_call.1} parent=1 // pred_check
      _
    $region35: #{tpu_custom_call.1} parent=1 // pred_check_branch
      %114 = sbr.rel (0) target = $region37
    $region36: #{tpu_custom_call.1} parent=1 // pred_region
      _
    $region37: #{tpu_custom_call.1} parent=1 // pred_fallthru
      _
    // Predicated region
    $region38: #{tpu_custom_call.1} parent=1 // pred_check
      _
    $region39: #{tpu_custom_call.1} parent=1 // pred_check_branch
      %116 = sbr.rel (0) target = $region41
    $region40: #{tpu_custom_call.1} parent=1 // pred_region
      %118 = vsyncadd [#allocation12], 0
      %s119 = sshll.u32 %s9, 4
      %s120 = int_to_ptr.hbm [resolvable:$true] %s119
      %s121 = sshll.u32 [#allocation13], 4
      %s122 = int_to_ptr.vmem [resolvable:$true] %s121
      %127 = dma.hbm_to_vmem [thread:$0]  %s120, 1024, %s122, [#allocation12], 64, 64, 4
    $region41: #{tpu_custom_call.1} parent=1 // pred_fallthru
      _
    // Predicated region
    $region42: #{tpu_custom_call.1} parent=1 // pred_check
      _
    $region43: #{tpu_custom_call.1} parent=1 // pred_check_branch
      %129 = sbr.rel (0) target = $region45
    $region44: #{tpu_custom_call.1} parent=1 // pred_region
      _
    $region45: #{tpu_custom_call.1} parent=1 // pred_fallthru
      _
    // Predicated region
    $region46: #{tpu_custom_call.1} parent=1 // pred_check
      _
    $region47: #{tpu_custom_call.1} parent=1 // pred_check_branch
      %131 = sbr.rel (0) target = $region49
    $region48: #{tpu_custom_call.1} parent=1 // pred_region
      %133 = vsyncadd [#allocation15], 0
      %s134 = sshll.u32 %s11, 4
      %s135 = int_to_ptr.hbm [resolvable:$true] %s134
      %s136 = sshll.u32 [#allocation14], 4
      %s137 = int_to_ptr.vmem [resolvable:$true] %s136
      %142 = dma.hbm_to_vmem [thread:$0]  %s135, 1024, %s137, [#allocation15], 64, 64, 4
    $region49: #{tpu_custom_call.1} parent=1 // pred_fallthru
      _
    // Predicated region
    $region50: #{tpu_custom_call.1} parent=1 // pred_check
      _
    $region51: #{tpu_custom_call.1} parent=1 // pred_check_branch
      %144 = sbr.rel (0) target = $region53
    $region52: #{tpu_custom_call.1} parent=1 // pred_region
      _
    $region53: #{tpu_custom_call.1} parent=1 // pred_fallthru
      _
    // Predicated region
    $region54: #{tpu_custom_call.1} parent=1 // pred_check
      _
    $region55: #{tpu_custom_call.1} parent=1 // pred_check_branch
      %146 = sbr.rel (0) target = $region57
    $region56: #{tpu_custom_call.1} parent=1 // pred_region
      %148 = vsyncadd [#allocation15], 0
      %s149 = sshll.u32 %s13, 4
      %s150 = int_to_ptr.hbm [resolvable:$true] %s149
      %s151 = sshll.u32 [#allocation16], 4
      %s152 = int_to_ptr.vmem [resolvable:$true] %s151
      %157 = dma.hbm_to_vmem [thread:$0]  %s150, 1024, %s152, [#allocation15], 64, 64, 4
    $region57: #{tpu_custom_call.1} parent=1 // pred_fallthru
      _
    // Predicated region
    $region58: #{tpu_custom_call.1} parent=1 // pred_check
      _
    $region59: #{tpu_custom_call.1} parent=1 // pred_check_branch
      %159 = sbr.rel (0) target = $region61
    $region60: #{tpu_custom_call.1} parent=1 // pred_region
      _
    $region61: #{tpu_custom_call.1} parent=1 // pred_fallthru
      _
    // Predicated region
    $region62: #{tpu_custom_call.1} parent=1 // pred_check
      _
    $region63: #{tpu_custom_call.1} parent=1 // pred_check_branch
      %161 = sbr.rel (0) target = $region65
    $region64: #{tpu_custom_call.1} parent=1 // pred_region
      %163 = vsyncadd [#allocation18], 0
      %s164 = sshll.u32 %s15, 4
      %s165 = int_to_ptr.hbm [resolvable:$true] %s164
      %s166 = sshll.u32 [#allocation17], 4
      %s167 = int_to_ptr.vmem [resolvable:$true] %s166
      %172 = dma.hbm_to_vmem [thread:$0]  %s165, 1024, %s167, [#allocation18], 64, 64, 4
    $region65: #{tpu_custom_call.1} parent=1 // pred_fallthru
      _
    // Predicated region
    $region66: #{tpu_custom_call.1} parent=1 // pred_check
      _
    $region67: #{tpu_custom_call.1} parent=1 // pred_check_branch
      %174 = sbr.rel (0) target = $region69
    $region68: #{tpu_custom_call.1} parent=1 // pred_region
      _
    $region69: #{tpu_custom_call.1} parent=1 // pred_fallthru
      _
    // Predicated region
    $region70: #{tpu_custom_call.1} parent=1 // pred_check
      _
    $region71: #{tpu_custom_call.1} parent=1 // pred_check_branch
      %176 = sbr.rel (0) target = $region73
    $region72: #{tpu_custom_call.1} parent=1 // pred_region
      %178 = vsyncadd [#allocation18], 0
      %s179 = sshll.u32 %s17, 4
      %s180 = int_to_ptr.hbm [resolvable:$true] %s179
      %s181 = sshll.u32 [#allocation19], 4
      %s182 = int_to_ptr.vmem [resolvable:$true] %s181
      %187 = dma.hbm_to_vmem [thread:$0]  %s180, 1024, %s182, [#allocation18], 64, 64, 4
    $region73: #{tpu_custom_call.1} parent=1 // pred_fallthru
      _
    // Predicated region
    $region74: #{tpu_custom_call.1} parent=1 // pred_check
      _
    $region75: #{tpu_custom_call.1} parent=1 // pred_check_branch
      %189 = sbr.rel (0) target = $region77
    $region76: #{tpu_custom_call.1} parent=1 // pred_region
      _
    $region77: #{tpu_custom_call.1} parent=1 // pred_fallthru
      _
    // Predicated region
    $region78: #{tpu_custom_call.1} parent=1 // pred_check
      _
    $region79: #{tpu_custom_call.1} parent=1 // pred_check_branch
      %191 = sbr.rel (0) target = $region81
    $region80: #{tpu_custom_call.1} parent=1 // pred_region
      %193 = dma.done [#allocation3], 1024
    $region81: #{tpu_custom_call.1} parent=1 // pred_fallthru
      _
    // Predicated region
    $region82: #{tpu_custom_call.1} parent=1 // pred_check
      _
    $region83: #{tpu_custom_call.1} parent=1 // pred_check_branch
      %195 = sbr.rel (0) target = $region85
    $region84: #{tpu_custom_call.1} parent=1 // pred_region
      %197 = dma.done [#allocation6], 1024
    $region85: #{tpu_custom_call.1} parent=1 // pred_fallthru
      _
    // Predicated region
    $region86: #{tpu_custom_call.1} parent=1 // pred_check
      _
    $region87: #{tpu_custom_call.1} parent=1 // pred_check_branch
      %199 = sbr.rel (0) target = $region89
    $region88: #{tpu_custom_call.1} parent=1 // pred_region
      %201 = dma.done [#allocation6], 128
    $region89: #{tpu_custom_call.1} parent=1 // pred_fallthru
      _
    // Predicated region
    $region90: #{tpu_custom_call.1} parent=1 // pred_check
      _
    $region91: #{tpu_custom_call.1} parent=1 // pred_check_branch
      %203 = sbr.rel (0) target = $region93
    $region92: #{tpu_custom_call.1} parent=1 // pred_region
      %205 = dma.done [#allocation9], 1024
    $region93: #{tpu_custom_call.1} parent=1 // pred_fallthru
      _
    // Predicated region
    $region94: #{tpu_custom_call.1} parent=1 // pred_check
      _
    $region95: #{tpu_custom_call.1} parent=1 // pred_check_branch
      %207 = sbr.rel (0) target = $region97
    $region96: #{tpu_custom_call.1} parent=1 // pred_region
      %209 = dma.done [#allocation9], 1024
    $region97: #{tpu_custom_call.1} parent=1 // pred_fallthru
      _
    // Predicated region
    $region98: #{tpu_custom_call.1} parent=1 // pred_check
      _
    $region99: #{tpu_custom_call.1} parent=1 // pred_check_branch
      %211 = sbr.rel (0) target = $region101
    $region100: #{tpu_custom_call.1} parent=1 // pred_region
      %213 = dma.done [#allocation12], 1024
    $region101: #{tpu_custom_call.1} parent=1 // pred_fallthru
      _
    // Predicated region
    $region102: #{tpu_custom_call.1} parent=1 // pred_check
      _
    $region103: #{tpu_custom_call.1} parent=1 // pred_check_branch
      %215 = sbr.rel (0) target = $region105
    $region104: #{tpu_custom_call.1} parent=1 // pred_region
      %217 = dma.done [#allocation12], 1024
    $region105: #{tpu_custom_call.1} parent=1 // pred_fallthru
      _
    // Predicated region
    $region106: #{tpu_custom_call.1} parent=1 // pred_check
      _
    $region107: #{tpu_custom_call.1} parent=1 // pred_check_branch
      %219 = sbr.rel (0) target = $region109
    $region108: #{tpu_custom_call.1} parent=1 // pred_region
      %221 = dma.done [#allocation15], 1024
    $region109: #{tpu_custom_call.1} parent=1 // pred_fallthru
      _
    // Predicated region
    $region110: #{tpu_custom_call.1} parent=1 // pred_check
      _
    $region111: #{tpu_custom_call.1} parent=1 // pred_check_branch
      %223 = sbr.rel (0) target = $region113
    $region112: #{tpu_custom_call.1} parent=1 // pred_region
      %225 = dma.done [#allocation15], 1024
    $region113: #{tpu_custom_call.1} parent=1 // pred_fallthru
      _
    // Predicated region
    $region114: #{tpu_custom_call.1} parent=1 // pred_check
      _
    $region115: #{tpu_custom_call.1} parent=1 // pred_check_branch
      %227 = sbr.rel (0) target = $region117
    $region116: #{tpu_custom_call.1} parent=1 // pred_region
      %229 = dma.done [#allocation18], 1024
    $region117: #{tpu_custom_call.1} parent=1 // pred_fallthru
      _
    // Predicated region
    $region118: #{tpu_custom_call.1} parent=1 // pred_check
      _
    $region119: #{tpu_custom_call.1} parent=1 // pred_check_branch
      %231 = sbr.rel (0) target = $region121
    $region120: #{tpu_custom_call.1} parent=1 // pred_region
      %233 = dma.done [#allocation18], 1024
    $region121: #{tpu_custom_call.1} parent=1 // pred_fallthru
      _
    %v234 = vld [vmem:[#allocation2] sm:$0xf]
    %v235 = vld [vmem:[#allocation2 + $0x4] sm:$0xf]
    %v236 = vld [vmem:[#allocation2 + $0x8] sm:$0xf]
    %v237 = vld [vmem:[#allocation2 + $0xc] sm:$0xf]
    %v238 = vld [vmem:[#allocation2 + $0x10] sm:$0xf]
    %v239 = vld [vmem:[#allocation2 + $0x14] sm:$0xf]
    %v240 = vld [vmem:[#allocation2 + $0x18] sm:$0xf]
    %v241 = vld [vmem:[#allocation2 + $0x1c] sm:$0xf]
    %v242 = vld [vmem:[#allocation2 + $0x20] sm:$0xf]
    %v243 = vld [vmem:[#allocation2 + $0x24] sm:$0xf]
    %v244 = vld [vmem:[#allocation2 + $0x28] sm:$0xf]
    %v245 = vld [vmem:[#allocation2 + $0x2c] sm:$0xf]
    %v246 = vld [vmem:[#allocation2 + $0x30] sm:$0xf]
    %v247 = vld [vmem:[#allocation2 + $0x34] sm:$0xf]
    %v248 = vld [vmem:[#allocation2 + $0x38] sm:$0xf]
    %v249 = vld [vmem:[#allocation2 + $0x3c] sm:$0xf]
    %v250 = vld [vmem:[#allocation5] sm:$0xf]
    %v251 = vld [vmem:[#allocation5 + $0x4] sm:$0xf]
    %v252 = vld [vmem:[#allocation5 + $0x8] sm:$0xf]
    %v253 = vld [vmem:[#allocation5 + $0xc] sm:$0xf]
    %v254 = vld [vmem:[#allocation5 + $0x10] sm:$0xf]
    %v255 = vld [vmem:[#allocation5 + $0x14] sm:$0xf]
    %v256 = vld [vmem:[#allocation5 + $0x18] sm:$0xf]
    %v257 = vld [vmem:[#allocation5 + $0x1c] sm:$0xf]
    %v258 = vld [vmem:[#allocation5 + $0x20] sm:$0xf]
    %v259 = vld [vmem:[#allocation5 + $0x24] sm:$0xf]
    %v260 = vld [vmem:[#allocation5 + $0x28] sm:$0xf]
    %v261 = vld [vmem:[#allocation5 + $0x2c] sm:$0xf]
    %v262 = vld [vmem:[#allocation5 + $0x30] sm:$0xf]
    %v263 = vld [vmem:[#allocation5 + $0x34] sm:$0xf]
    %v264 = vld [vmem:[#allocation5 + $0x38] sm:$0xf]
    %v265 = vld [vmem:[#allocation5 + $0x3c] sm:$0xf]
    %v266 = vld [vmem:[#allocation8] sm:$0xf]
    %v267 = vld [vmem:[#allocation8 + $0x4] sm:$0xf]
    %v268 = vld [vmem:[#allocation8 + $0x8] sm:$0xf]
    %v269 = vld [vmem:[#allocation8 + $0xc] sm:$0xf]
    %v270 = vld [vmem:[#allocation8 + $0x10] sm:$0xf]
    %v271 = vld [vmem:[#allocation8 + $0x14] sm:$0xf]
    %v272 = vld [vmem:[#allocation8 + $0x18] sm:$0xf]
    %v273 = vld [vmem:[#allocation8 + $0x1c] sm:$0xf]
    %v274 = vld [vmem:[#allocation8 + $0x20] sm:$0xf]
    %v275 = vld [vmem:[#allocation8 + $0x24] sm:$0xf]
    %v276 = vld [vmem:[#allocation8 + $0x28] sm:$0xf]
    %v277 = vld [vmem:[#allocation8 + $0x2c] sm:$0xf]
    %v278 = vld [vmem:[#allocation8 + $0x30] sm:$0xf]
    %v279 = vld [vmem:[#allocation8 + $0x34] sm:$0xf]
    %v280 = vld [vmem:[#allocation8 + $0x38] sm:$0xf]
    %v281 = vld [vmem:[#allocation8 + $0x3c] sm:$0xf]
    %v282 = vld [vmem:[%s4] sm:$0x1]
    %v283 = vld [vmem:[#allocation10] sm:$0xf]
    %v284 = vld [vmem:[#allocation10 + $0x4] sm:$0xf]
    %v285 = vld [vmem:[#allocation10 + $0x8] sm:$0xf]
    %v286 = vld [vmem:[#allocation10 + $0xc] sm:$0xf]
    %v287 = vld [vmem:[#allocation10 + $0x10] sm:$0xf]
    %v288 = vld [vmem:[#allocation10 + $0x14] sm:$0xf]
    %v289 = vld [vmem:[#allocation10 + $0x18] sm:$0xf]
    %v290 = vld [vmem:[#allocation10 + $0x1c] sm:$0xf]
    %v291 = vld [vmem:[#allocation10 + $0x20] sm:$0xf]
    %v292 = vld [vmem:[#allocation10 + $0x24] sm:$0xf]
    %v293 = vld [vmem:[#allocation10 + $0x28] sm:$0xf]
    %v294 = vld [vmem:[#allocation10 + $0x2c] sm:$0xf]
    %v295 = vld [vmem:[#allocation10 + $0x30] sm:$0xf]
    %v296 = vld [vmem:[#allocation10 + $0x34] sm:$0xf]
    %v297 = vld [vmem:[#allocation10 + $0x38] sm:$0xf]
    %v298 = vld [vmem:[#allocation10 + $0x3c] sm:$0xf]
    %v299 = vld [vmem:[%s6] sm:$0x1]
    %v316 = vunpack.c.l.b16 %v234
    %v317 = vunpack.c.l.b16 %v235
    %v318 = vunpack.c.l.b16 %v236
    %v319 = vunpack.c.l.b16 %v237
    %v320 = vunpack.c.l.b16 %v238
    %v321 = vunpack.c.l.b16 %v239
    %v322 = vunpack.c.l.b16 %v240
    %v323 = vunpack.c.l.b16 %v241
    %v324 = vunpack.c.l.b16 %v242
    %v325 = vunpack.c.l.b16 %v243
    %v326 = vunpack.c.l.b16 %v244
    %v327 = vunpack.c.l.b16 %v245
    %v328 = vunpack.c.l.b16 %v246
    %v329 = vunpack.c.l.b16 %v247
    %v330 = vunpack.c.l.b16 %v248
    %v331 = vunpack.c.l.b16 %v249
    %v332 = vpack.c.b16 %v317, %v316
    %v333 = vpack.c.b16 %v319, %v318
    %v334 = vpack.c.b16 %v321, %v320
    %v335 = vpack.c.b16 %v323, %v322
    %v336 = vpack.c.b16 %v325, %v324
    %v337 = vpack.c.b16 %v327, %v326
    %v338 = vpack.c.b16 %v329, %v328
    %v339 = vpack.c.b16 %v331, %v330
    %v364 = vunpack.c.l.b16 %v250
    %v365 = vunpack.c.l.b16 %v251
    %v366 = vunpack.c.l.b16 %v252
    %v367 = vunpack.c.l.b16 %v253
    %v368 = vunpack.c.l.b16 %v254
    %v369 = vunpack.c.l.b16 %v255
    %v370 = vunpack.c.l.b16 %v256
    %v371 = vunpack.c.l.b16 %v257
    %v372 = vunpack.c.l.b16 %v258
    %v373 = vunpack.c.l.b16 %v259
    %v374 = vunpack.c.l.b16 %v260
    %v375 = vunpack.c.l.b16 %v261
    %v376 = vunpack.c.l.b16 %v262
    %v377 = vunpack.c.l.b16 %v263
    %v378 = vunpack.c.l.b16 %v264
    %v379 = vunpack.c.l.b16 %v265
    %v380 = vpack.c.b16 %v365, %v364
    %v381 = vpack.c.b16 %v367, %v366
    %v382 = vpack.c.b16 %v369, %v368
    %v383 = vpack.c.b16 %v371, %v370
    %v384 = vpack.c.b16 %v373, %v372
    %v385 = vpack.c.b16 %v375, %v374
    %v386 = vpack.c.b16 %v377, %v376
    %v387 = vpack.c.b16 %v379, %v378
    %396 = vmatpush.bf16.msra.mxu0 %v387
    %397 = vmatpush.bf16.msra.mxu0 %v386
    %398 = vmatpush.bf16.msra.mxu0 %v385
    %399 = vmatpush.bf16.msra.mxu0 %v384
    %400 = vmatpush.bf16.msra.mxu0 %v383
    %401 = vmatpush.bf16.msra.mxu0 %v382
    %402 = vmatpush.bf16.msra.mxu0 %v381
    %403 = vmatpush.bf16.msra.mxu0 %v380
    %404 = vmatmul.bf16.gmra.mxu0 %v332
    %v405 = vpop.f32.mrf.mxu0
    %v406 = vadd.f32 0.0, %v405
    %v407 = vpop.f32.mrf.mxu0
    %v408 = vadd.f32 0.0, %v407
    %409 = vmatmul.bf16.gmra.mxu0 %v333
    %v410 = vpop.f32.mrf.mxu0
    %v411 = vadd.f32 0.0, %v410
    %v412 = vpop.f32.mrf.mxu0
    %v413 = vadd.f32 0.0, %v412
    %414 = vmatmul.bf16.gmra.mxu0 %v334
    %v415 = vpop.f32.mrf.mxu0
    %v416 = vadd.f32 0.0, %v415
    %v417 = vpop.f32.mrf.mxu0
    %v418 = vadd.f32 0.0, %v417
    %419 = vmatmul.bf16.gmra.mxu0 %v335
    %v420 = vpop.f32.mrf.mxu0
    %v421 = vadd.f32 0.0, %v420
    %v422 = vpop.f32.mrf.mxu0
    %v423 = vadd.f32 0.0, %v422
    %424 = vmatmul.bf16.gmra.mxu0 %v336
    %v425 = vpop.f32.mrf.mxu0
    %v426 = vadd.f32 0.0, %v425
    %v427 = vpop.f32.mrf.mxu0
    %v428 = vadd.f32 0.0, %v427
    %429 = vmatmul.bf16.gmra.mxu0 %v337
    %v430 = vpop.f32.mrf.mxu0
    %v431 = vadd.f32 0.0, %v430
    %v432 = vpop.f32.mrf.mxu0
    %v433 = vadd.f32 0.0, %v432
    %434 = vmatmul.bf16.gmra.mxu0 %v338
    %v435 = vpop.f32.mrf.mxu0
    %v436 = vadd.f32 0.0, %v435
    %v437 = vpop.f32.mrf.mxu0
    %v438 = vadd.f32 0.0, %v437
    %439 = vmatmul.bf16.gmra.mxu0 %v339
    %v440 = vpop.f32.mrf.mxu0
    %v441 = vadd.f32 0.0, %v440
    %v442 = vpop.f32.mrf.mxu0
    %v443 = vadd.f32 0.0, %v442
    %444 = vdwg.mxu0
    %v445 = vpack.c.bf16 %v408, %v406
    %v446 = vpack.c.bf16 %v413, %v411
    %v447 = vpack.c.bf16 %v418, %v416
    %v448 = vpack.c.bf16 %v423, %v421
    %v449 = vpack.c.bf16 %v428, %v426
    %v450 = vpack.c.bf16 %v433, %v431
    %v451 = vpack.c.bf16 %v438, %v436
    %v452 = vpack.c.bf16 %v443, %v441
    %v454 = vperm.slane %v282, 0
    %v472 = vunpack.c.l.b16 %v266
    %v473 = vunpack.c.l.b16 %v267
    %v474 = vunpack.c.l.b16 %v268
    %v475 = vunpack.c.l.b16 %v269
    %v476 = vunpack.c.l.b16 %v270
    %v477 = vunpack.c.l.b16 %v271
    %v478 = vunpack.c.l.b16 %v272
    %v479 = vunpack.c.l.b16 %v273
    %v480 = vunpack.c.l.b16 %v274
    %v481 = vunpack.c.l.b16 %v275
    %v482 = vunpack.c.l.b16 %v276
    %v483 = vunpack.c.l.b16 %v277
    %v484 = vunpack.c.l.b16 %v278
    %v485 = vunpack.c.l.b16 %v279
    %v486 = vunpack.c.l.b16 %v280
    %v487 = vunpack.c.l.b16 %v281
    %v488 = vpack.c.b16 %v473, %v472
    %v489 = vpack.c.b16 %v475, %v474
    %v490 = vpack.c.b16 %v477, %v476
    %v491 = vpack.c.b16 %v479, %v478
    %v492 = vpack.c.b16 %v481, %v480
    %v493 = vpack.c.b16 %v483, %v482
    %v494 = vpack.c.b16 %v485, %v484
    %v495 = vpack.c.b16 %v487, %v486
    %504 = vmatpush.bf16.msra.mxu0 %v495
    %505 = vmatpush.bf16.msra.mxu0 %v494
    %506 = vmatpush.bf16.msra.mxu0 %v493
    %507 = vmatpush.bf16.msra.mxu0 %v492
    %508 = vmatpush.bf16.msra.mxu0 %v491
    %509 = vmatpush.bf16.msra.mxu0 %v490
    %510 = vmatpush.bf16.msra.mxu0 %v489
    %511 = vmatpush.bf16.msra.mxu0 %v488
    %512 = vmatmul.bf16.gmra.mxu0 %v445
    %v513 = vpop.f32.mrf.mxu0
    %v514 = vadd.f32 %v454, %v513
    %v515 = vpop.f32.mrf.mxu0
    %v516 = vadd.f32 %v454, %v515
    %517 = vmatmul.bf16.gmra.mxu0 %v446
    %v518 = vpop.f32.mrf.mxu0
    %v519 = vadd.f32 %v454, %v518
    %v520 = vpop.f32.mrf.mxu0
    %v521 = vadd.f32 %v454, %v520
    %522 = vmatmul.bf16.gmra.mxu0 %v447
    %v523 = vpop.f32.mrf.mxu0
    %v524 = vadd.f32 %v454, %v523
    %v525 = vpop.f32.mrf.mxu0
    %v526 = vadd.f32 %v454, %v525
    %527 = vmatmul.bf16.gmra.mxu0 %v448
    %v528 = vpop.f32.mrf.mxu0
    %v529 = vadd.f32 %v454, %v528
    %v530 = vpop.f32.mrf.mxu0
    %v531 = vadd.f32 %v454, %v530
    %532 = vmatmul.bf16.gmra.mxu0 %v449
    %v533 = vpop.f32.mrf.mxu0
    %v534 = vadd.f32 %v454, %v533
    %v535 = vpop.f32.mrf.mxu0
    %v536 = vadd.f32 %v454, %v535
    %537 = vmatmul.bf16.gmra.mxu0 %v450
    %v538 = vpop.f32.mrf.mxu0
    %v539 = vadd.f32 %v454, %v538
    %v540 = vpop.f32.mrf.mxu0
    %v541 = vadd.f32 %v454, %v540
    %542 = vmatmul.bf16.gmra.mxu0 %v451
    %v543 = vpop.f32.mrf.mxu0
    %v544 = vadd.f32 %v454, %v543
    %v545 = vpop.f32.mrf.mxu0
    %v546 = vadd.f32 %v454, %v545
    %547 = vmatmul.bf16.gmra.mxu0 %v452
    %v548 = vpop.f32.mrf.mxu0
    %v549 = vadd.f32 %v454, %v548
    %v550 = vpop.f32.mrf.mxu0
    %v551 = vadd.f32 %v454, %v550
    %552 = vdwg.mxu0
    %v553 = vmax.f32 %v514, 0.0
    %v554 = vmax.f32 %v516, 0.0
    %v555 = vmax.f32 %v519, 0.0
    %v556 = vmax.f32 %v521, 0.0
    %v557 = vmax.f32 %v524, 0.0
    %v558 = vmax.f32 %v526, 0.0
    %v559 = vmax.f32 %v529, 0.0
    %v560 = vmax.f32 %v531, 0.0
    %v561 = vmax.f32 %v534, 0.0
    %v562 = vmax.f32 %v536, 0.0
    %v563 = vmax.f32 %v539, 0.0
    %v564 = vmax.f32 %v541, 0.0
    %v565 = vmax.f32 %v544, 0.0
    %v566 = vmax.f32 %v546, 0.0
    %v567 = vmax.f32 %v549, 0.0
    %v568 = vmax.f32 %v551, 0.0
    %v569 = vpack.c.bf16 %v554, %v553
    %v570 = vpack.c.bf16 %v556, %v555
    %v571 = vpack.c.bf16 %v558, %v557
    %v572 = vpack.c.bf16 %v560, %v559
    %v573 = vpack.c.bf16 %v562, %v561
    %v574 = vpack.c.bf16 %v564, %v563
    %v575 = vpack.c.bf16 %v566, %v565
    %v576 = vpack.c.bf16 %v568, %v567
    %v578 = vperm.slane %v299, 0
    %v596 = vunpack.c.l.b16 %v283
    %v597 = vunpack.c.l.b16 %v284
    %v598 = vunpack.c.l.b16 %v285
    %v599 = vunpack.c.l.b16 %v286
    %v600 = vunpack.c.l.b16 %v287
    %v601 = vunpack.c.l.b16 %v288
    %v602 = vunpack.c.l.b16 %v289
    %v603 = vunpack.c.l.b16 %v290
    %v604 = vunpack.c.l.b16 %v291
    %v605 = vunpack.c.l.b16 %v292
    %v606 = vunpack.c.l.b16 %v293
    %v607 = vunpack.c.l.b16 %v294
    %v608 = vunpack.c.l.b16 %v295
    %v609 = vunpack.c.l.b16 %v296
    %v610 = vunpack.c.l.b16 %v297
    %v611 = vunpack.c.l.b16 %v298
    %v612 = vpack.c.b16 %v597, %v596
    %v613 = vpack.c.b16 %v599, %v598
    %v614 = vpack.c.b16 %v601, %v600
    %v615 = vpack.c.b16 %v603, %v602
    %v616 = vpack.c.b16 %v605, %v604
    %v617 = vpack.c.b16 %v607, %v606
    %v618 = vpack.c.b16 %v609, %v608
    %v619 = vpack.c.b16 %v611, %v610
    %628 = vmatpush.bf16.msra.mxu0 %v619
    %629 = vmatpush.bf16.msra.mxu0 %v618
    %630 = vmatpush.bf16.msra.mxu0 %v617
    %631 = vmatpush.bf16.msra.mxu0 %v616
    %632 = vmatpush.bf16.msra.mxu0 %v615
    %633 = vmatpush.bf16.msra.mxu0 %v614
    %634 = vmatpush.bf16.msra.mxu0 %v613
    %635 = vmatpush.bf16.msra.mxu0 %v612
    %636 = vmatmul.bf16.gmra.mxu0 %v569
    %v637 = vpop.f32.mrf.mxu0
    %v638 = vadd.f32 %v578, %v637
    %v639 = vpop.f32.mrf.mxu0
    %v640 = vadd.f32 %v578, %v639
    %641 = vmatmul.bf16.gmra.mxu0 %v570
    %v642 = vpop.f32.mrf.mxu0
    %v643 = vadd.f32 %v578, %v642
    %v644 = vpop.f32.mrf.mxu0
    %v645 = vadd.f32 %v578, %v644
    %646 = vmatmul.bf16.gmra.mxu0 %v571
    %v647 = vpop.f32.mrf.mxu0
    %v648 = vadd.f32 %v578, %v647
    %v649 = vpop.f32.mrf.mxu0
    %v650 = vadd.f32 %v578, %v649
    %651 = vmatmul.bf16.gmra.mxu0 %v572
    %v652 = vpop.f32.mrf.mxu0
    %v653 = vadd.f32 %v578, %v652
    %v654 = vpop.f32.mrf.mxu0
    %v655 = vadd.f32 %v578, %v654
    %656 = vmatmul.bf16.gmra.mxu0 %v573
    %v657 = vpop.f32.mrf.mxu0
    %v658 = vadd.f32 %v578, %v657
    %v659 = vpop.f32.mrf.mxu0
    %v660 = vadd.f32 %v578, %v659
    %661 = vmatmul.bf16.gmra.mxu0 %v574
    %v662 = vpop.f32.mrf.mxu0
    %v663 = vadd.f32 %v578, %v662
    %v664 = vpop.f32.mrf.mxu0
    %v665 = vadd.f32 %v578, %v664
    %666 = vmatmul.bf16.gmra.mxu0 %v575
    %v667 = vpop.f32.mrf.mxu0
    %v668 = vadd.f32 %v578, %v667
    %v669 = vpop.f32.mrf.mxu0
    %v670 = vadd.f32 %v578, %v669
    %671 = vmatmul.bf16.gmra.mxu0 %v576
    %v672 = vpop.f32.mrf.mxu0
    %v673 = vadd.f32 %v578, %v672
    %v674 = vpop.f32.mrf.mxu0
    %v675 = vadd.f32 %v578, %v674
    %676 = vdwg.mxu0
    %v677 = vmax.f32 %v638, 0.0
    %v678 = vmax.f32 %v640, 0.0
    %v679 = vmax.f32 %v643, 0.0
    %v680 = vmax.f32 %v645, 0.0
    %v681 = vmax.f32 %v648, 0.0
    %v682 = vmax.f32 %v650, 0.0
    %v683 = vmax.f32 %v653, 0.0
    %v684 = vmax.f32 %v655, 0.0
    %v685 = vmax.f32 %v658, 0.0
    %v686 = vmax.f32 %v660, 0.0
    %v687 = vmax.f32 %v663, 0.0
    %v688 = vmax.f32 %v665, 0.0
    %v689 = vmax.f32 %v668, 0.0
    %v690 = vmax.f32 %v670, 0.0
    %v691 = vmax.f32 %v673, 0.0
    %v692 = vmax.f32 %v675, 0.0
    %v693 = vpack.c.bf16 %v678, %v677
    %v694 = vpack.c.bf16 %v680, %v679
    %v695 = vpack.c.bf16 %v682, %v681
    %v696 = vpack.c.bf16 %v684, %v683
    %v697 = vpack.c.bf16 %v686, %v685
    %v698 = vpack.c.bf16 %v688, %v687
    %v699 = vpack.c.bf16 %v690, %v689
    %v700 = vpack.c.bf16 %v692, %v691
    %v701 = vld [vmem:[#allocation11] sm:$0xf]
    %v702 = vld [vmem:[#allocation11 + $0x4] sm:$0xf]
    %v703 = vld [vmem:[#allocation11 + $0x8] sm:$0xf]
    %v704 = vld [vmem:[#allocation11 + $0xc] sm:$0xf]
    %v705 = vld [vmem:[#allocation11 + $0x10] sm:$0xf]
    %v706 = vld [vmem:[#allocation11 + $0x14] sm:$0xf]
    %v707 = vld [vmem:[#allocation11 + $0x18] sm:$0xf]
    %v708 = vld [vmem:[#allocation11 + $0x1c] sm:$0xf]
    %v709 = vld [vmem:[#allocation11 + $0x20] sm:$0xf]
    %v710 = vld [vmem:[#allocation11 + $0x24] sm:$0xf]
    %v711 = vld [vmem:[#allocation11 + $0x28] sm:$0xf]
    %v712 = vld [vmem:[#allocation11 + $0x2c] sm:$0xf]
    %v713 = vld [vmem:[#allocation11 + $0x30] sm:$0xf]
    %v714 = vld [vmem:[#allocation11 + $0x34] sm:$0xf]
    %v715 = vld [vmem:[#allocation11 + $0x38] sm:$0xf]
    %v716 = vld [vmem:[#allocation11 + $0x3c] sm:$0xf]
    %v717 = vld [vmem:[%s8] sm:$0x1]
    %v718 = vld [vmem:[#allocation13] sm:$0xf]
    %v719 = vld [vmem:[#allocation13 + $0x4] sm:$0xf]
    %v720 = vld [vmem:[#allocation13 + $0x8] sm:$0xf]
    %v721 = vld [vmem:[#allocation13 + $0xc] sm:$0xf]
    %v722 = vld [vmem:[#allocation13 + $0x10] sm:$0xf]
    %v723 = vld [vmem:[#allocation13 + $0x14] sm:$0xf]
    %v724 = vld [vmem:[#allocation13 + $0x18] sm:$0xf]
    %v725 = vld [vmem:[#allocation13 + $0x1c] sm:$0xf]
    %v726 = vld [vmem:[#allocation13 + $0x20] sm:$0xf]
    %v727 = vld [vmem:[#allocation13 + $0x24] sm:$0xf]
    %v728 = vld [vmem:[#allocation13 + $0x28] sm:$0xf]
    %v729 = vld [vmem:[#allocation13 + $0x2c] sm:$0xf]
    %v730 = vld [vmem:[#allocation13 + $0x30] sm:$0xf]
    %v731 = vld [vmem:[#allocation13 + $0x34] sm:$0xf]
    %v732 = vld [vmem:[#allocation13 + $0x38] sm:$0xf]
    %v733 = vld [vmem:[#allocation13 + $0x3c] sm:$0xf]
    %v734 = vld [vmem:[%s10] sm:$0x1]
    %735 = vmatpush.bf16.msra.mxu0 %v700
    %736 = vmatpush.bf16.msra.mxu0 %v699
    %737 = vmatpush.bf16.msra.mxu0 %v698
    %738 = vmatpush.bf16.msra.mxu0 %v697
    %739 = vmatpush.bf16.msra.mxu0 %v696
    %740 = vmatpush.bf16.msra.mxu0 %v695
    %741 = vmatpush.bf16.msra.mxu0 %v694
    %742 = vmatpush.bf16.msra.mxu0 %v693
    %743 = vmatmul.bf16.gmra.mxu0 %v332
    %v744 = vpop.f32.mrf.mxu0
    %v745 = vadd.f32 0.0, %v744
    %v746 = vpop.f32.mrf.mxu0
    %v747 = vadd.f32 0.0, %v746
    %748 = vmatmul.bf16.gmra.mxu0 %v333
    %v749 = vpop.f32.mrf.mxu0
    %v750 = vadd.f32 0.0, %v749
    %v751 = vpop.f32.mrf.mxu0
    %v752 = vadd.f32 0.0, %v751
    %753 = vmatmul.bf16.gmra.mxu0 %v334
    %v754 = vpop.f32.mrf.mxu0
    %v755 = vadd.f32 0.0, %v754
    %v756 = vpop.f32.mrf.mxu0
    %v757 = vadd.f32 0.0, %v756
    %758 = vmatmul.bf16.gmra.mxu0 %v335
    %v759 = vpop.f32.mrf.mxu0
    %v760 = vadd.f32 0.0, %v759
    %v761 = vpop.f32.mrf.mxu0
    %v762 = vadd.f32 0.0, %v761
    %763 = vmatmul.bf16.gmra.mxu0 %v336
    %v764 = vpop.f32.mrf.mxu0
    %v765 = vadd.f32 0.0, %v764
    %v766 = vpop.f32.mrf.mxu0
    %v767 = vadd.f32 0.0, %v766
    %768 = vmatmul.bf16.gmra.mxu0 %v337
    %v769 = vpop.f32.mrf.mxu0
    %v770 = vadd.f32 0.0, %v769
    %v771 = vpop.f32.mrf.mxu0
    %v772 = vadd.f32 0.0, %v771
    %773 = vmatmul.bf16.gmra.mxu0 %v338
    %v774 = vpop.f32.mrf.mxu0
    %v775 = vadd.f32 0.0, %v774
    %v776 = vpop.f32.mrf.mxu0
    %v777 = vadd.f32 0.0, %v776
    %778 = vmatmul.bf16.gmra.mxu0 %v339
    %v779 = vpop.f32.mrf.mxu0
    %v780 = vadd.f32 0.0, %v779
    %v781 = vpop.f32.mrf.mxu0
    %v782 = vadd.f32 0.0, %v781
    %783 = vdwg.mxu0
    %v784 = vpack.c.bf16 %v747, %v745
    %v785 = vpack.c.bf16 %v752, %v750
    %v786 = vpack.c.bf16 %v757, %v755
    %v787 = vpack.c.bf16 %v762, %v760
    %v788 = vpack.c.bf16 %v767, %v765
    %v789 = vpack.c.bf16 %v772, %v770
    %v790 = vpack.c.bf16 %v777, %v775
    %v791 = vpack.c.bf16 %v782, %v780
    %v793 = vperm.slane %v717, 0
    %v811 = vunpack.c.l.b16 %v701
    %v812 = vunpack.c.l.b16 %v702
    %v813 = vunpack.c.l.b16 %v703
    %v814 = vunpack.c.l.b16 %v704
    %v815 = vunpack.c.l.b16 %v705
    %v816 = vunpack.c.l.b16 %v706
    %v817 = vunpack.c.l.b16 %v707
    %v818 = vunpack.c.l.b16 %v708
    %v819 = vunpack.c.l.b16 %v709
    %v820 = vunpack.c.l.b16 %v710
    %v821 = vunpack.c.l.b16 %v711
    %v822 = vunpack.c.l.b16 %v712
    %v823 = vunpack.c.l.b16 %v713
    %v824 = vunpack.c.l.b16 %v714
    %v825 = vunpack.c.l.b16 %v715
    %v826 = vunpack.c.l.b16 %v716
    %v827 = vpack.c.b16 %v812, %v811
    %v828 = vpack.c.b16 %v814, %v813
    %v829 = vpack.c.b16 %v816, %v815
    %v830 = vpack.c.b16 %v818, %v817
    %v831 = vpack.c.b16 %v820, %v819
    %v832 = vpack.c.b16 %v822, %v821
    %v833 = vpack.c.b16 %v824, %v823
    %v834 = vpack.c.b16 %v826, %v825
    %843 = vmatpush.bf16.msra.mxu0 %v834
    %844 = vmatpush.bf16.msra.mxu0 %v833
    %845 = vmatpush.bf16.msra.mxu0 %v832
    %846 = vmatpush.bf16.msra.mxu0 %v831
    %847 = vmatpush.bf16.msra.mxu0 %v830
    %848 = vmatpush.bf16.msra.mxu0 %v829
    %849 = vmatpush.bf16.msra.mxu0 %v828
    %850 = vmatpush.bf16.msra.mxu0 %v827
    %851 = vmatmul.bf16.gmra.mxu0 %v784
    %v852 = vpop.f32.mrf.mxu0
    %v853 = vadd.f32 %v793, %v852
    %v854 = vpop.f32.mrf.mxu0
    %v855 = vadd.f32 %v793, %v854
    %856 = vmatmul.bf16.gmra.mxu0 %v785
    %v857 = vpop.f32.mrf.mxu0
    %v858 = vadd.f32 %v793, %v857
    %v859 = vpop.f32.mrf.mxu0
    %v860 = vadd.f32 %v793, %v859
    %861 = vmatmul.bf16.gmra.mxu0 %v786
    %v862 = vpop.f32.mrf.mxu0
    %v863 = vadd.f32 %v793, %v862
    %v864 = vpop.f32.mrf.mxu0
    %v865 = vadd.f32 %v793, %v864
    %866 = vmatmul.bf16.gmra.mxu0 %v787
    %v867 = vpop.f32.mrf.mxu0
    %v868 = vadd.f32 %v793, %v867
    %v869 = vpop.f32.mrf.mxu0
    %v870 = vadd.f32 %v793, %v869
    %871 = vmatmul.bf16.gmra.mxu0 %v788
    %v872 = vpop.f32.mrf.mxu0
    %v873 = vadd.f32 %v793, %v872
    %v874 = vpop.f32.mrf.mxu0
    %v875 = vadd.f32 %v793, %v874
    %876 = vmatmul.bf16.gmra.mxu0 %v789
    %v877 = vpop.f32.mrf.mxu0
    %v878 = vadd.f32 %v793, %v877
    %v879 = vpop.f32.mrf.mxu0
    %v880 = vadd.f32 %v793, %v879
    %881 = vmatmul.bf16.gmra.mxu0 %v790
    %v882 = vpop.f32.mrf.mxu0
    %v883 = vadd.f32 %v793, %v882
    %v884 = vpop.f32.mrf.mxu0
    %v885 = vadd.f32 %v793, %v884
    %886 = vmatmul.bf16.gmra.mxu0 %v791
    %v887 = vpop.f32.mrf.mxu0
    %v888 = vadd.f32 %v793, %v887
    %v889 = vpop.f32.mrf.mxu0
    %v890 = vadd.f32 %v793, %v889
    %891 = vdwg.mxu0
    %v892 = vmax.f32 %v853, 0.0
    %v893 = vmax.f32 %v855, 0.0
    %v894 = vmax.f32 %v858, 0.0
    %v895 = vmax.f32 %v860, 0.0
    %v896 = vmax.f32 %v863, 0.0
    %v897 = vmax.f32 %v865, 0.0
    %v898 = vmax.f32 %v868, 0.0
    %v899 = vmax.f32 %v870, 0.0
    %v900 = vmax.f32 %v873, 0.0
    %v901 = vmax.f32 %v875, 0.0
    %v902 = vmax.f32 %v878, 0.0
    %v903 = vmax.f32 %v880, 0.0
    %v904 = vmax.f32 %v883, 0.0
    %v905 = vmax.f32 %v885, 0.0
    %v906 = vmax.f32 %v888, 0.0
    %v907 = vmax.f32 %v890, 0.0
    %v908 = vpack.c.bf16 %v893, %v892
    %v909 = vpack.c.bf16 %v895, %v894
    %v910 = vpack.c.bf16 %v897, %v896
    %v911 = vpack.c.bf16 %v899, %v898
    %v912 = vpack.c.bf16 %v901, %v900
    %v913 = vpack.c.bf16 %v903, %v902
    %v914 = vpack.c.bf16 %v905, %v904
    %v915 = vpack.c.bf16 %v907, %v906
    %v917 = vperm.slane %v734, 0
    %v935 = vunpack.c.l.b16 %v718
    %v936 = vunpack.c.l.b16 %v719
    %v937 = vunpack.c.l.b16 %v720
    %v938 = vunpack.c.l.b16 %v721
    %v939 = vunpack.c.l.b16 %v722
    %v940 = vunpack.c.l.b16 %v723
    %v941 = vunpack.c.l.b16 %v724
    %v942 = vunpack.c.l.b16 %v725
    %v943 = vunpack.c.l.b16 %v726
    %v944 = vunpack.c.l.b16 %v727
    %v945 = vunpack.c.l.b16 %v728
    %v946 = vunpack.c.l.b16 %v729
    %v947 = vunpack.c.l.b16 %v730
    %v948 = vunpack.c.l.b16 %v731
    %v949 = vunpack.c.l.b16 %v732
    %v950 = vunpack.c.l.b16 %v733
    %v951 = vpack.c.b16 %v936, %v935
    %v952 = vpack.c.b16 %v938, %v937
    %v953 = vpack.c.b16 %v940, %v939
    %v954 = vpack.c.b16 %v942, %v941
    %v955 = vpack.c.b16 %v944, %v943
    %v956 = vpack.c.b16 %v946, %v945
    %v957 = vpack.c.b16 %v948, %v947
    %v958 = vpack.c.b16 %v950, %v949
    %967 = vmatpush.bf16.msra.mxu0 %v958
    %968 = vmatpush.bf16.msra.mxu0 %v957
    %969 = vmatpush.bf16.msra.mxu0 %v956
    %970 = vmatpush.bf16.msra.mxu0 %v955
    %971 = vmatpush.bf16.msra.mxu0 %v954
    %972 = vmatpush.bf16.msra.mxu0 %v953
    %973 = vmatpush.bf16.msra.mxu0 %v952
    %974 = vmatpush.bf16.msra.mxu0 %v951
    %975 = vmatmul.bf16.gmra.mxu0 %v908
    %v976 = vpop.f32.mrf.mxu0
    %v977 = vadd.f32 %v917, %v976
    %v978 = vpop.f32.mrf.mxu0
    %v979 = vadd.f32 %v917, %v978
    %980 = vmatmul.bf16.gmra.mxu0 %v909
    %v981 = vpop.f32.mrf.mxu0
    %v982 = vadd.f32 %v917, %v981
    %v983 = vpop.f32.mrf.mxu0
    %v984 = vadd.f32 %v917, %v983
    %985 = vmatmul.bf16.gmra.mxu0 %v910
    %v986 = vpop.f32.mrf.mxu0
    %v987 = vadd.f32 %v917, %v986
    %v988 = vpop.f32.mrf.mxu0
    %v989 = vadd.f32 %v917, %v988
    %990 = vmatmul.bf16.gmra.mxu0 %v911
    %v991 = vpop.f32.mrf.mxu0
    %v992 = vadd.f32 %v917, %v991
    %v993 = vpop.f32.mrf.mxu0
    %v994 = vadd.f32 %v917, %v993
    %995 = vmatmul.bf16.gmra.mxu0 %v912
    %v996 = vpop.f32.mrf.mxu0
    %v997 = vadd.f32 %v917, %v996
    %v998 = vpop.f32.mrf.mxu0
    %v999 = vadd.f32 %v917, %v998
    %1000 = vmatmul.bf16.gmra.mxu0 %v913
    %v1001 = vpop.f32.mrf.mxu0
    %v1002 = vadd.f32 %v917, %v1001
    %v1003 = vpop.f32.mrf.mxu0
    %v1004 = vadd.f32 %v917, %v1003
    %1005 = vmatmul.bf16.gmra.mxu0 %v914
    %v1006 = vpop.f32.mrf.mxu0
    %v1007 = vadd.f32 %v917, %v1006
    %v1008 = vpop.f32.mrf.mxu0
    %v1009 = vadd.f32 %v917, %v1008
    %1010 = vmatmul.bf16.gmra.mxu0 %v915
    %v1011 = vpop.f32.mrf.mxu0
    %v1012 = vadd.f32 %v917, %v1011
    %v1013 = vpop.f32.mrf.mxu0
    %v1014 = vadd.f32 %v917, %v1013
    %1015 = vdwg.mxu0
    %v1016 = vmax.f32 %v977, 0.0
    %v1017 = vmax.f32 %v979, 0.0
    %v1018 = vmax.f32 %v982, 0.0
    %v1019 = vmax.f32 %v984, 0.0
    %v1020 = vmax.f32 %v987, 0.0
    %v1021 = vmax.f32 %v989, 0.0
    %v1022 = vmax.f32 %v992, 0.0
    %v1023 = vmax.f32 %v994, 0.0
    %v1024 = vmax.f32 %v997, 0.0
    %v1025 = vmax.f32 %v999, 0.0
    %v1026 = vmax.f32 %v1002, 0.0
    %v1027 = vmax.f32 %v1004, 0.0
    %v1028 = vmax.f32 %v1007, 0.0
    %v1029 = vmax.f32 %v1009, 0.0
    %v1030 = vmax.f32 %v1012, 0.0
    %v1031 = vmax.f32 %v1014, 0.0
    %v1032 = vpack.c.bf16 %v1017, %v1016
    %v1033 = vpack.c.bf16 %v1019, %v1018
    %v1034 = vpack.c.bf16 %v1021, %v1020
    %v1035 = vpack.c.bf16 %v1023, %v1022
    %v1036 = vpack.c.bf16 %v1025, %v1024
    %v1037 = vpack.c.bf16 %v1027, %v1026
    %v1038 = vpack.c.bf16 %v1029, %v1028
    %v1039 = vpack.c.bf16 %v1031, %v1030
    %v1040 = vld [vmem:[#allocation14] sm:$0xf]
    %v1041 = vld [vmem:[#allocation14 + $0x4] sm:$0xf]
    %v1042 = vld [vmem:[#allocation14 + $0x8] sm:$0xf]
    %v1043 = vld [vmem:[#allocation14 + $0xc] sm:$0xf]
    %v1044 = vld [vmem:[#allocation14 + $0x10] sm:$0xf]
    %v1045 = vld [vmem:[#allocation14 + $0x14] sm:$0xf]
    %v1046 = vld [vmem:[#allocation14 + $0x18] sm:$0xf]
    %v1047 = vld [vmem:[#allocation14 + $0x1c] sm:$0xf]
    %v1048 = vld [vmem:[#allocation14 + $0x20] sm:$0xf]
    %v1049 = vld [vmem:[#allocation14 + $0x24] sm:$0xf]
    %v1050 = vld [vmem:[#allocation14 + $0x28] sm:$0xf]
    %v1051 = vld [vmem:[#allocation14 + $0x2c] sm:$0xf]
    %v1052 = vld [vmem:[#allocation14 + $0x30] sm:$0xf]
    %v1053 = vld [vmem:[#allocation14 + $0x34] sm:$0xf]
    %v1054 = vld [vmem:[#allocation14 + $0x38] sm:$0xf]
    %v1055 = vld [vmem:[#allocation14 + $0x3c] sm:$0xf]
    %v1056 = vld [vmem:[%s12] sm:$0x1]
    %v1057 = vld [vmem:[#allocation16] sm:$0xf]
    %v1058 = vld [vmem:[#allocation16 + $0x4] sm:$0xf]
    %v1059 = vld [vmem:[#allocation16 + $0x8] sm:$0xf]
    %v1060 = vld [vmem:[#allocation16 + $0xc] sm:$0xf]
    %v1061 = vld [vmem:[#allocation16 + $0x10] sm:$0xf]
    %v1062 = vld [vmem:[#allocation16 + $0x14] sm:$0xf]
    %v1063 = vld [vmem:[#allocation16 + $0x18] sm:$0xf]
    %v1064 = vld [vmem:[#allocation16 + $0x1c] sm:$0xf]
    %v1065 = vld [vmem:[#allocation16 + $0x20] sm:$0xf]
    %v1066 = vld [vmem:[#allocation16 + $0x24] sm:$0xf]
    %v1067 = vld [vmem:[#allocation16 + $0x28] sm:$0xf]
    %v1068 = vld [vmem:[#allocation16 + $0x2c] sm:$0xf]
    %v1069 = vld [vmem:[#allocation16 + $0x30] sm:$0xf]
    %v1070 = vld [vmem:[#allocation16 + $0x34] sm:$0xf]
    %v1071 = vld [vmem:[#allocation16 + $0x38] sm:$0xf]
    %v1072 = vld [vmem:[#allocation16 + $0x3c] sm:$0xf]
    %v1073 = vld [vmem:[%s14] sm:$0x1]
    %1074 = vmatpush.bf16.msra.mxu0 %v1039
    %1075 = vmatpush.bf16.msra.mxu0 %v1038
    %1076 = vmatpush.bf16.msra.mxu0 %v1037
    %1077 = vmatpush.bf16.msra.mxu0 %v1036
    %1078 = vmatpush.bf16.msra.mxu0 %v1035
    %1079 = vmatpush.bf16.msra.mxu0 %v1034
    %1080 = vmatpush.bf16.msra.mxu0 %v1033
    %1081 = vmatpush.bf16.msra.mxu0 %v1032
    %1082 = vmatmul.bf16.gmra.mxu0 %v332
    %v1083 = vpop.f32.mrf.mxu0
    %v1084 = vadd.f32 0.0, %v1083
    %v1085 = vpop.f32.mrf.mxu0
    %v1086 = vadd.f32 0.0, %v1085
    %1087 = vmatmul.bf16.gmra.mxu0 %v333
    %v1088 = vpop.f32.mrf.mxu0
    %v1089 = vadd.f32 0.0, %v1088
    %v1090 = vpop.f32.mrf.mxu0
    %v1091 = vadd.f32 0.0, %v1090
    %1092 = vmatmul.bf16.gmra.mxu0 %v334
    %v1093 = vpop.f32.mrf.mxu0
    %v1094 = vadd.f32 0.0, %v1093
    %v1095 = vpop.f32.mrf.mxu0
    %v1096 = vadd.f32 0.0, %v1095
    %1097 = vmatmul.bf16.gmra.mxu0 %v335
    %v1098 = vpop.f32.mrf.mxu0
    %v1099 = vadd.f32 0.0, %v1098
    %v1100 = vpop.f32.mrf.mxu0
    %v1101 = vadd.f32 0.0, %v1100
    %1102 = vmatmul.bf16.gmra.mxu0 %v336
    %v1103 = vpop.f32.mrf.mxu0
    %v1104 = vadd.f32 0.0, %v1103
    %v1105 = vpop.f32.mrf.mxu0
    %v1106 = vadd.f32 0.0, %v1105
    %1107 = vmatmul.bf16.gmra.mxu0 %v337
    %v1108 = vpop.f32.mrf.mxu0
    %v1109 = vadd.f32 0.0, %v1108
    %v1110 = vpop.f32.mrf.mxu0
    %v1111 = vadd.f32 0.0, %v1110
    %1112 = vmatmul.bf16.gmra.mxu0 %v338
    %v1113 = vpop.f32.mrf.mxu0
    %v1114 = vadd.f32 0.0, %v1113
    %v1115 = vpop.f32.mrf.mxu0
    %v1116 = vadd.f32 0.0, %v1115
    %1117 = vmatmul.bf16.gmra.mxu0 %v339
    %v1118 = vpop.f32.mrf.mxu0
    %v1119 = vadd.f32 0.0, %v1118
    %v1120 = vpop.f32.mrf.mxu0
    %v1121 = vadd.f32 0.0, %v1120
    %1122 = vdwg.mxu0
    %v1123 = vpack.c.bf16 %v1086, %v1084
    %v1124 = vpack.c.bf16 %v1091, %v1089
    %v1125 = vpack.c.bf16 %v1096, %v1094
    %v1126 = vpack.c.bf16 %v1101, %v1099
    %v1127 = vpack.c.bf16 %v1106, %v1104
    %v1128 = vpack.c.bf16 %v1111, %v1109
    %v1129 = vpack.c.bf16 %v1116, %v1114
    %v1130 = vpack.c.bf16 %v1121, %v1119
    %v1132 = vperm.slane %v1056, 0
    %v1150 = vunpack.c.l.b16 %v1040
    %v1151 = vunpack.c.l.b16 %v1041
    %v1152 = vunpack.c.l.b16 %v1042
    %v1153 = vunpack.c.l.b16 %v1043
    %v1154 = vunpack.c.l.b16 %v1044
    %v1155 = vunpack.c.l.b16 %v1045
    %v1156 = vunpack.c.l.b16 %v1046
    %v1157 = vunpack.c.l.b16 %v1047
    %v1158 = vunpack.c.l.b16 %v1048
    %v1159 = vunpack.c.l.b16 %v1049
    %v1160 = vunpack.c.l.b16 %v1050
    %v1161 = vunpack.c.l.b16 %v1051
    %v1162 = vunpack.c.l.b16 %v1052
    %v1163 = vunpack.c.l.b16 %v1053
    %v1164 = vunpack.c.l.b16 %v1054
    %v1165 = vunpack.c.l.b16 %v1055
    %v1166 = vpack.c.b16 %v1151, %v1150
    %v1167 = vpack.c.b16 %v1153, %v1152
    %v1168 = vpack.c.b16 %v1155, %v1154
    %v1169 = vpack.c.b16 %v1157, %v1156
    %v1170 = vpack.c.b16 %v1159, %v1158
    %v1171 = vpack.c.b16 %v1161, %v1160
    %v1172 = vpack.c.b16 %v1163, %v1162
    %v1173 = vpack.c.b16 %v1165, %v1164
    %1182 = vmatpush.bf16.msra.mxu0 %v1173
    %1183 = vmatpush.bf16.msra.mxu0 %v1172
    %1184 = vmatpush.bf16.msra.mxu0 %v1171
    %1185 = vmatpush.bf16.msra.mxu0 %v1170
    %1186 = vmatpush.bf16.msra.mxu0 %v1169
    %1187 = vmatpush.bf16.msra.mxu0 %v1168
    %1188 = vmatpush.bf16.msra.mxu0 %v1167
    %1189 = vmatpush.bf16.msra.mxu0 %v1166
    %1190 = vmatmul.bf16.gmra.mxu0 %v1123
    %v1191 = vpop.f32.mrf.mxu0
    %v1192 = vadd.f32 %v1132, %v1191
    %v1193 = vpop.f32.mrf.mxu0
    %v1194 = vadd.f32 %v1132, %v1193
    %1195 = vmatmul.bf16.gmra.mxu0 %v1124
    %v1196 = vpop.f32.mrf.mxu0
    %v1197 = vadd.f32 %v1132, %v1196
    %v1198 = vpop.f32.mrf.mxu0
    %v1199 = vadd.f32 %v1132, %v1198
    %1200 = vmatmul.bf16.gmra.mxu0 %v1125
    %v1201 = vpop.f32.mrf.mxu0
    %v1202 = vadd.f32 %v1132, %v1201
    %v1203 = vpop.f32.mrf.mxu0
    %v1204 = vadd.f32 %v1132, %v1203
    %1205 = vmatmul.bf16.gmra.mxu0 %v1126
    %v1206 = vpop.f32.mrf.mxu0
    %v1207 = vadd.f32 %v1132, %v1206
    %v1208 = vpop.f32.mrf.mxu0
    %v1209 = vadd.f32 %v1132, %v1208
    %1210 = vmatmul.bf16.gmra.mxu0 %v1127
    %v1211 = vpop.f32.mrf.mxu0
    %v1212 = vadd.f32 %v1132, %v1211
    %v1213 = vpop.f32.mrf.mxu0
    %v1214 = vadd.f32 %v1132, %v1213
    %1215 = vmatmul.bf16.gmra.mxu0 %v1128
    %v1216 = vpop.f32.mrf.mxu0
    %v1217 = vadd.f32 %v1132, %v1216
    %v1218 = vpop.f32.mrf.mxu0
    %v1219 = vadd.f32 %v1132, %v1218
    %1220 = vmatmul.bf16.gmra.mxu0 %v1129
    %v1221 = vpop.f32.mrf.mxu0
    %v1222 = vadd.f32 %v1132, %v1221
    %v1223 = vpop.f32.mrf.mxu0
    %v1224 = vadd.f32 %v1132, %v1223
    %1225 = vmatmul.bf16.gmra.mxu0 %v1130
    %v1226 = vpop.f32.mrf.mxu0
    %v1227 = vadd.f32 %v1132, %v1226
    %v1228 = vpop.f32.mrf.mxu0
    %v1229 = vadd.f32 %v1132, %v1228
    %1230 = vdwg.mxu0
    %v1231 = vmax.f32 %v1192, 0.0
    %v1232 = vmax.f32 %v1194, 0.0
    %v1233 = vmax.f32 %v1197, 0.0
    %v1234 = vmax.f32 %v1199, 0.0
    %v1235 = vmax.f32 %v1202, 0.0
    %v1236 = vmax.f32 %v1204, 0.0
    %v1237 = vmax.f32 %v1207, 0.0
    %v1238 = vmax.f32 %v1209, 0.0
    %v1239 = vmax.f32 %v1212, 0.0
    %v1240 = vmax.f32 %v1214, 0.0
    %v1241 = vmax.f32 %v1217, 0.0
    %v1242 = vmax.f32 %v1219, 0.0
    %v1243 = vmax.f32 %v1222, 0.0
    %v1244 = vmax.f32 %v1224, 0.0
    %v1245 = vmax.f32 %v1227, 0.0
    %v1246 = vmax.f32 %v1229, 0.0
    %v1247 = vpack.c.bf16 %v1232, %v1231
    %v1248 = vpack.c.bf16 %v1234, %v1233
    %v1249 = vpack.c.bf16 %v1236, %v1235
    %v1250 = vpack.c.bf16 %v1238, %v1237
    %v1251 = vpack.c.bf16 %v1240, %v1239
    %v1252 = vpack.c.bf16 %v1242, %v1241
    %v1253 = vpack.c.bf16 %v1244, %v1243
    %v1254 = vpack.c.bf16 %v1246, %v1245
    %v1256 = vperm.slane %v1073, 0
    %v1274 = vunpack.c.l.b16 %v1057
    %v1275 = vunpack.c.l.b16 %v1058
    %v1276 = vunpack.c.l.b16 %v1059
    %v1277 = vunpack.c.l.b16 %v1060
    %v1278 = vunpack.c.l.b16 %v1061
    %v1279 = vunpack.c.l.b16 %v1062
    %v1280 = vunpack.c.l.b16 %v1063
    %v1281 = vunpack.c.l.b16 %v1064
    %v1282 = vunpack.c.l.b16 %v1065
    %v1283 = vunpack.c.l.b16 %v1066
    %v1284 = vunpack.c.l.b16 %v1067
    %v1285 = vunpack.c.l.b16 %v1068
    %v1286 = vunpack.c.l.b16 %v1069
    %v1287 = vunpack.c.l.b16 %v1070
    %v1288 = vunpack.c.l.b16 %v1071
    %v1289 = vunpack.c.l.b16 %v1072
    %v1290 = vpack.c.b16 %v1275, %v1274
    %v1291 = vpack.c.b16 %v1277, %v1276
    %v1292 = vpack.c.b16 %v1279, %v1278
    %v1293 = vpack.c.b16 %v1281, %v1280
    %v1294 = vpack.c.b16 %v1283, %v1282
    %v1295 = vpack.c.b16 %v1285, %v1284
    %v1296 = vpack.c.b16 %v1287, %v1286
    %v1297 = vpack.c.b16 %v1289, %v1288
    %1306 = vmatpush.bf16.msra.mxu0 %v1297
    %1307 = vmatpush.bf16.msra.mxu0 %v1296
    %1308 = vmatpush.bf16.msra.mxu0 %v1295
    %1309 = vmatpush.bf16.msra.mxu0 %v1294
    %1310 = vmatpush.bf16.msra.mxu0 %v1293
    %1311 = vmatpush.bf16.msra.mxu0 %v1292
    %1312 = vmatpush.bf16.msra.mxu0 %v1291
    %1313 = vmatpush.bf16.msra.mxu0 %v1290
    %1314 = vmatmul.bf16.gmra.mxu0 %v1247
    %v1315 = vpop.f32.mrf.mxu0
    %v1316 = vadd.f32 %v1256, %v1315
    %v1317 = vpop.f32.mrf.mxu0
    %v1318 = vadd.f32 %v1256, %v1317
    %1319 = vmatmul.bf16.gmra.mxu0 %v1248
    %v1320 = vpop.f32.mrf.mxu0
    %v1321 = vadd.f32 %v1256, %v1320
    %v1322 = vpop.f32.mrf.mxu0
    %v1323 = vadd.f32 %v1256, %v1322
    %1324 = vmatmul.bf16.gmra.mxu0 %v1249
    %v1325 = vpop.f32.mrf.mxu0
    %v1326 = vadd.f32 %v1256, %v1325
    %v1327 = vpop.f32.mrf.mxu0
    %v1328 = vadd.f32 %v1256, %v1327
    %1329 = vmatmul.bf16.gmra.mxu0 %v1250
    %v1330 = vpop.f32.mrf.mxu0
    %v1331 = vadd.f32 %v1256, %v1330
    %v1332 = vpop.f32.mrf.mxu0
    %v1333 = vadd.f32 %v1256, %v1332
    %1334 = vmatmul.bf16.gmra.mxu0 %v1251
    %v1335 = vpop.f32.mrf.mxu0
    %v1336 = vadd.f32 %v1256, %v1335
    %v1337 = vpop.f32.mrf.mxu0
    %v1338 = vadd.f32 %v1256, %v1337
    %1339 = vmatmul.bf16.gmra.mxu0 %v1252
    %v1340 = vpop.f32.mrf.mxu0
    %v1341 = vadd.f32 %v1256, %v1340
    %v1342 = vpop.f32.mrf.mxu0
    %v1343 = vadd.f32 %v1256, %v1342
    %1344 = vmatmul.bf16.gmra.mxu0 %v1253
    %v1345 = vpop.f32.mrf.mxu0
    %v1346 = vadd.f32 %v1256, %v1345
    %v1347 = vpop.f32.mrf.mxu0
    %v1348 = vadd.f32 %v1256, %v1347
    %1349 = vmatmul.bf16.gmra.mxu0 %v1254
    %v1350 = vpop.f32.mrf.mxu0
    %v1351 = vadd.f32 %v1256, %v1350
    %v1352 = vpop.f32.mrf.mxu0
    %v1353 = vadd.f32 %v1256, %v1352
    %1354 = vdwg.mxu0
    %v1355 = vmax.f32 %v1316, 0.0
    %v1356 = vmax.f32 %v1318, 0.0
    %v1357 = vmax.f32 %v1321, 0.0
    %v1358 = vmax.f32 %v1323, 0.0
    %v1359 = vmax.f32 %v1326, 0.0
    %v1360 = vmax.f32 %v1328, 0.0
    %v1361 = vmax.f32 %v1331, 0.0
    %v1362 = vmax.f32 %v1333, 0.0
    %v1363 = vmax.f32 %v1336, 0.0
    %v1364 = vmax.f32 %v1338, 0.0
    %v1365 = vmax.f32 %v1341, 0.0
    %v1366 = vmax.f32 %v1343, 0.0
    %v1367 = vmax.f32 %v1346, 0.0
    %v1368 = vmax.f32 %v1348, 0.0
    %v1369 = vmax.f32 %v1351, 0.0
    %v1370 = vmax.f32 %v1353, 0.0
    %v1371 = vpack.c.bf16 %v1356, %v1355
    %v1372 = vpack.c.bf16 %v1358, %v1357
    %v1373 = vpack.c.bf16 %v1360, %v1359
    %v1374 = vpack.c.bf16 %v1362, %v1361
    %v1375 = vpack.c.bf16 %v1364, %v1363
    %v1376 = vpack.c.bf16 %v1366, %v1365
    %v1377 = vpack.c.bf16 %v1368, %v1367
    %v1378 = vpack.c.bf16 %v1370, %v1369
    %v1379 = vld [vmem:[#allocation17] sm:$0xf]
    %v1380 = vld [vmem:[#allocation17 + $0x4] sm:$0xf]
    %v1381 = vld [vmem:[#allocation17 + $0x8] sm:$0xf]
    %v1382 = vld [vmem:[#allocation17 + $0xc] sm:$0xf]
    %v1383 = vld [vmem:[#allocation17 + $0x10] sm:$0xf]
    %v1384 = vld [vmem:[#allocation17 + $0x14] sm:$0xf]
    %v1385 = vld [vmem:[#allocation17 + $0x18] sm:$0xf]
    %v1386 = vld [vmem:[#allocation17 + $0x1c] sm:$0xf]
    %v1387 = vld [vmem:[#allocation17 + $0x20] sm:$0xf]
    %v1388 = vld [vmem:[#allocation17 + $0x24] sm:$0xf]
    %v1389 = vld [vmem:[#allocation17 + $0x28] sm:$0xf]
    %v1390 = vld [vmem:[#allocation17 + $0x2c] sm:$0xf]
    %v1391 = vld [vmem:[#allocation17 + $0x30] sm:$0xf]
    %v1392 = vld [vmem:[#allocation17 + $0x34] sm:$0xf]
    %v1393 = vld [vmem:[#allocation17 + $0x38] sm:$0xf]
    %v1394 = vld [vmem:[#allocation17 + $0x3c] sm:$0xf]
    %v1395 = vld [vmem:[%s16] sm:$0x1]
    %v1396 = vld [vmem:[#allocation19] sm:$0xf]
    %v1397 = vld [vmem:[#allocation19 + $0x4] sm:$0xf]
    %v1398 = vld [vmem:[#allocation19 + $0x8] sm:$0xf]
    %v1399 = vld [vmem:[#allocation19 + $0xc] sm:$0xf]
    %v1400 = vld [vmem:[#allocation19 + $0x10] sm:$0xf]
    %v1401 = vld [vmem:[#allocation19 + $0x14] sm:$0xf]
    %v1402 = vld [vmem:[#allocation19 + $0x18] sm:$0xf]
    %v1403 = vld [vmem:[#allocation19 + $0x1c] sm:$0xf]
    %v1404 = vld [vmem:[#allocation19 + $0x20] sm:$0xf]
    %v1405 = vld [vmem:[#allocation19 + $0x24] sm:$0xf]
    %v1406 = vld [vmem:[#allocation19 + $0x28] sm:$0xf]
    %v1407 = vld [vmem:[#allocation19 + $0x2c] sm:$0xf]
    %v1408 = vld [vmem:[#allocation19 + $0x30] sm:$0xf]
    %v1409 = vld [vmem:[#allocation19 + $0x34] sm:$0xf]
    %v1410 = vld [vmem:[#allocation19 + $0x38] sm:$0xf]
    %v1411 = vld [vmem:[#allocation19 + $0x3c] sm:$0xf]
    %v1412 = vld [vmem:[%s18] sm:$0x1]
    %v1413 = vld [vmem:[#allocation7] sm:$0xf]
    %v1414 = vld [vmem:[#allocation7 + $0x4] sm:$0xf]
    %v1417 = vunpack.c.l.b16 %v1413
    %v1418 = vunpack.c.l.b16 %v1414
    %v1419 = vpack.c.b16 %v1418, %v1417
    %1421 = vmatpush.bf16.msra.mxu0 %v1378
    %1422 = vmatpush.bf16.msra.mxu0 %v1377
    %1423 = vmatpush.bf16.msra.mxu0 %v1376
    %1424 = vmatpush.bf16.msra.mxu0 %v1375
    %1425 = vmatpush.bf16.msra.mxu0 %v1374
    %1426 = vmatpush.bf16.msra.mxu0 %v1373
    %1427 = vmatpush.bf16.msra.mxu0 %v1372
    %1428 = vmatpush.bf16.msra.mxu0 %v1371
    %1429 = vmatmul.bf16.gmra.mxu0 %v1419
    %v1430 = vpop.f32.mrf.mxu0
    %v1431 = vadd.f32 0.0, %v1430
    %v1432 = vpop.f32.mrf.mxu0
    %v1433 = vadd.f32 0.0, %v1432
    %1434 = vdwg.mxu0
    %v1435 = vpack.c.bf16 %v1433, %v1431
    %v1437 = vperm.slane %v1395, 0
    %v1455 = vunpack.c.l.b16 %v1379
    %v1456 = vunpack.c.l.b16 %v1380
    %v1457 = vunpack.c.l.b16 %v1381
    %v1458 = vunpack.c.l.b16 %v1382
    %v1459 = vunpack.c.l.b16 %v1383
    %v1460 = vunpack.c.l.b16 %v1384
    %v1461 = vunpack.c.l.b16 %v1385
    %v1462 = vunpack.c.l.b16 %v1386
    %v1463 = vunpack.c.l.b16 %v1387
    %v1464 = vunpack.c.l.b16 %v1388
    %v1465 = vunpack.c.l.b16 %v1389
    %v1466 = vunpack.c.l.b16 %v1390
    %v1467 = vunpack.c.l.b16 %v1391
    %v1468 = vunpack.c.l.b16 %v1392
    %v1469 = vunpack.c.l.b16 %v1393
    %v1470 = vunpack.c.l.b16 %v1394
    %v1471 = vpack.c.b16 %v1456, %v1455
    %v1472 = vpack.c.b16 %v1458, %v1457
    %v1473 = vpack.c.b16 %v1460, %v1459
    %v1474 = vpack.c.b16 %v1462, %v1461
    %v1475 = vpack.c.b16 %v1464, %v1463
    %v1476 = vpack.c.b16 %v1466, %v1465
    %v1477 = vpack.c.b16 %v1468, %v1467
    %v1478 = vpack.c.b16 %v1470, %v1469
    %1487 = vmatpush.bf16.msra.mxu0 %v1478
    %1488 = vmatpush.bf16.msra.mxu0 %v1477
    %1489 = vmatpush.bf16.msra.mxu0 %v1476
    %1490 = vmatpush.bf16.msra.mxu0 %v1475
    %1491 = vmatpush.bf16.msra.mxu0 %v1474
    %1492 = vmatpush.bf16.msra.mxu0 %v1473
    %1493 = vmatpush.bf16.msra.mxu0 %v1472
    %1494 = vmatpush.bf16.msra.mxu0 %v1471
    %1495 = vmatmul.bf16.gmra.mxu0 %v1435
    %v1496 = vpop.f32.mrf.mxu0
    %v1497 = vadd.f32 %v1437, %v1496
    %v1498 = vpop.f32.mrf.mxu0
    %v1499 = vadd.f32 %v1437, %v1498
    %1500 = vdwg.mxu0
    %v1501 = vmax.f32 %v1497, 0.0
    %v1502 = vmax.f32 %v1499, 0.0
    %v1503 = vpack.c.bf16 %v1502, %v1501
    %v1505 = vperm.slane %v1412, 0
    %v1523 = vunpack.c.l.b16 %v1396
    %v1524 = vunpack.c.l.b16 %v1397
    %v1525 = vunpack.c.l.b16 %v1398
    %v1526 = vunpack.c.l.b16 %v1399
    %v1527 = vunpack.c.l.b16 %v1400
    %v1528 = vunpack.c.l.b16 %v1401
    %v1529 = vunpack.c.l.b16 %v1402
    %v1530 = vunpack.c.l.b16 %v1403
    %v1531 = vunpack.c.l.b16 %v1404
    %v1532 = vunpack.c.l.b16 %v1405
    %v1533 = vunpack.c.l.b16 %v1406
    %v1534 = vunpack.c.l.b16 %v1407
    %v1535 = vunpack.c.l.b16 %v1408
    %v1536 = vunpack.c.l.b16 %v1409
    %v1537 = vunpack.c.l.b16 %v1410
    %v1538 = vunpack.c.l.b16 %v1411
    %v1539 = vpack.c.b16 %v1524, %v1523
    %v1540 = vpack.c.b16 %v1526, %v1525
    %v1541 = vpack.c.b16 %v1528, %v1527
    %v1542 = vpack.c.b16 %v1530, %v1529
    %v1543 = vpack.c.b16 %v1532, %v1531
    %v1544 = vpack.c.b16 %v1534, %v1533
    %v1545 = vpack.c.b16 %v1536, %v1535
    %v1546 = vpack.c.b16 %v1538, %v1537
    %1555 = vmatpush.bf16.msra.mxu0 %v1546
    %1556 = vmatpush.bf16.msra.mxu0 %v1545
    %1557 = vmatpush.bf16.msra.mxu0 %v1544
    %1558 = vmatpush.bf16.msra.mxu0 %v1543
    %1559 = vmatpush.bf16.msra.mxu0 %v1542
    %1560 = vmatpush.bf16.msra.mxu0 %v1541
    %1561 = vmatpush.bf16.msra.mxu0 %v1540
    %1562 = vmatpush.bf16.msra.mxu0 %v1539
    %1563 = vmatmul.bf16.gmra.mxu0 %v1503
    %v1564 = vpop.f32.mrf.mxu0
    %v1565 = vadd.f32 %v1505, %v1564
    %v1566 = vpop.f32.mrf.mxu0
    %v1567 = vadd.f32 %v1505, %v1566
    %1568 = vdwg.mxu0
    %1569 = vst [vmem:[#allocation20] sm:$0xff] %v1565
    %1570 = vst [vmem:[#allocation20 + $0x8] sm:$0xff] %v1567
    // Predicated region
    $region122: #{tpu_custom_call.1} parent=1 // pred_check
      _
    $region123: #{tpu_custom_call.1} parent=1 // pred_check_branch
      %1572 = sbr.rel (0) target = $region125
    $region124: #{tpu_custom_call.1} parent=1 // pred_region
      %1574 = vsyncadd [#allocation4], 0
      %s1575 = sshll.u32 [#allocation20], 4
      %s1576 = int_to_ptr.vmem [resolvable:$true] %s1575
      %s1577 = sshll.u32 %s19, 4
      %s1578 = int_to_ptr.hbm [resolvable:$true] %s1577
      %1583 = dma.vmem_to_hbm [thread:$0]  %s1576, 256, %s1578, [#allocation4], 128, 128, 8
    $region125: #{tpu_custom_call.1} parent=1 // pred_fallthru
      _
    // Predicated region
    $region126: #{tpu_custom_call.1} parent=1 // pred_check
      _
    $region127: #{tpu_custom_call.1} parent=1 // pred_check_branch
      %1585 = sbr.rel (0) target = $region129
    $region128: #{tpu_custom_call.1} parent=1 // pred_region
      %1587 = dma.done [#allocation4], 256
    $region129: #{tpu_custom_call.1} parent=1 // pred_fallthru
      _
    %1588 = vsyncpa [#allocation3], 1
    %1589 = vsyncpa [#allocation6], 1
    %1590 = vsyncpa [#allocation9], 1
    %1591 = vsyncpa [#allocation12], 1
    %1592 = vsyncpa [#allocation15], 1
    %1593 = vsyncpa [#allocation18], 1
    %1594 = vsyncpa [#allocation4], 1

</llo_original>
